<compile_context>
chip_gen: v6e
topology: v6e:2x2x1
jax: 0.10.0
libtpu: 0.0.40
codegen_flags: <defaults>
</compile_context>

<pallas_src>
import functools

import jax
import jax.numpy as jnp
from jax import lax
from jax.experimental import pallas as pl
from jax.experimental.pallas import tpu as pltpu


def _pick_tile_ho(hout, max_rows=32):
    """Largest divisor of Hout that is a multiple of 8 (sublane tile) and
    <= max_rows.  Gives >= 2 grid steps along H when possible (keeps the
    per-step VMEM window small and gives both v7x TensorCores work)."""
    for d in range(min(max_rows, hout - 1), 0, -1):
        if hout % d == 0 and d % 8 == 0:
            return d
    return hout


def _fused_conv3daware_kernel(x_ref, w_ref, b_ref, o_ref, *,
                              C, H, w3, K, pad, tile_ho, Wout):
    # x_ref : (C, H + 2*pad, 3*w3)   input, zero-padded along H only
    # w_ref : (Cout, K*K*3*C)        conv weights, columns ordered (kh, kw, c)
    # b_ref : (Cout, 1)
    # o_ref : (Cout, tile_ho, Wout)  one H-tile of the NCHW output
    W = 3 * w3
    R = tile_ho + K - 1                       # rows of this tile's halo window
    dt = x_ref.dtype
    t = pl.program_id(1)
    ho0 = pl.multiple_of(t * tile_ho, tile_ho)

    # ---- per-plane means, computed on-chip (never round-tripped to HBM) ----
    x_all = x_ref[...]                        # (C, H+2p, W)
    inv_h = jnp.asarray(1.0 / H, dt)
    # mean over H of each plane; padded rows are zero so sum/H is exact.
    mh = [jnp.sum(x_all[:, :, p * w3:(p + 1) * w3], axis=1, keepdims=True) * inv_h
          for p in range(3)]                  # each (C, 1, w3)

    # ---- row window covering this output tile plus its conv halo -----------
    xw = x_ref[:, pl.ds(ho0, R), :]           # (C, R, W)
    # mean over the plane width, per row (zero for the padded halo rows).
    mw = [jnp.mean(xw[:, :, p * w3:(p + 1) * w3], axis=2, keepdims=True)
          for p in range(3)]                  # each (C, R, 1)

    # Rows of the window inside the un-padded image: the H-broadcast mean
    # channels must be zero inside the conv zero-padding border.
    row = lax.broadcasted_iota(jnp.int32, (1, R, 1), 1) + ho0
    row_ok = jnp.logical_and(row >= pad, row < pad + H).astype(dt)

    def bw(m):   # width-mean -> constant along the plane width
        return jnp.broadcast_to(m, (C, R, w3))

    def bh(m):   # height-mean -> constant along H, masked in padded rows
        return jnp.broadcast_to(m, (C, R, w3)) * row_ok

    # 3D-aware channel groups, rolled out along width as  xy | yz | xz.
    # grp1: [mean_w(yz) | mean_h(xy) | mean_w(xy)]
    # grp2: [mean_w(xz) | mean_h(xz) | mean_h(yz)]
    grp1 = jnp.concatenate([bw(mw[1]), bh(mh[0]), bw(mw[0])], axis=2)
    grp2 = jnp.concatenate([bw(mw[2]), bh(mh[2]), bh(mh[1])], axis=2)
    aware = jnp.concatenate([xw, grp1, grp2], axis=0)       # (3C, R, W)
    if pad > 0:                                             # conv width padding
        zcol = jnp.zeros((3 * C, R, pad), dt)
        aware = jnp.concatenate([zcol, aware, zcol], axis=2)  # (3C, R, W+2p)

    # ---- conv: one (Cout, 3C*K*K) x (3C*K*K, Wout) MXU matmul per row ------
    w_mat = w_ref[...]                                      # (Cout, K*K*3C)
    b_col = b_ref[...].astype(jnp.float32)                  # (Cout, 1)
    for oh in range(tile_ho):                               # statically unrolled
        pieces = []
        for kh in range(K):
            arow = aware[:, oh + kh, :]                     # (3C, W+2p)
            for kw in range(K):
                pieces.append(arow[:, kw:kw + Wout])        # (3C, Wout)
        g = jnp.concatenate(pieces, axis=0)                 # (3C*K*K, Wout)
        acc = jnp.dot(w_mat, g, preferred_element_type=jnp.float32) + b_col
        o_ref[:, oh, :] = acc.astype(dt)


@functools.partial(jax.jit, static_argnames=("stride", "padding", "tile_ho"))
def conv3d_aware_dmtet_rollout(x, weight, bias, *, stride=1, padding=1,
                               tile_ho=None):
    """Forward of Conv3DAware_dmtet (rolloutORgroup='rollout').

    x      : (N, C, H, 3*w3)   rolled-out triplane, NCHW
    weight : (Cout, 3*C, K, K) Conv2d(in_channels*3, out_channels, K) weight
    bias   : (Cout,)
    returns: (N, Cout, Hout, Wout) NCHW
    """
    # TODO(synk): only the 'rollout' variant and stride=1 are implemented.
    assert stride == 1, "fused kernel only supports stride=1"
    N, C, H, W = x.shape
    assert W % 3 == 0, "rolled-out width must be 3 * w3"
    w3 = W // 3
    Cout, cin3, K, K2 = weight.shape
    assert K == K2 and cin3 == 3 * C
    pad = padding
    Hp = H + 2 * pad
    Hout = H + 2 * pad - K + 1
    Wout = W + 2 * pad - K + 1

    if tile_ho is None:
        tile_ho = _pick_tile_ho(Hout)
    assert Hout % tile_ho == 0

    # Tiny XLA glue only: H-pad of x (so in-kernel row windows never go OOB),
    # weight re-layout (kh, kw, c)-major, bias as a column.
    xpad = jnp.pad(x, ((0, 0), (0, 0), (pad, pad), (0, 0)))
    w_mat = jnp.transpose(weight, (0, 2, 3, 1)).reshape(Cout, K * K * 3 * C)
    b_col = bias.reshape(Cout, 1).astype(x.dtype)

    # Rough per-step VMEM footprint -> raise the scoped limit for large tiles.
    itemsize = jnp.dtype(x.dtype).itemsize
    R = tile_ho + K - 1
    est_bytes = itemsize * (
        2 * C * Hp * W                        # double-buffered input block
        + 2 * Cout * tile_ho * Wout           # double-buffered output block
        + 6 * 3 * C * R * (W + 2 * pad)       # aware window + shifted slices
        + 2 * Cout * (K * K * 3 * C + 1))
    cp = {"dimension_semantics": ("parallel", "parallel")}
    if est_bytes > (12 << 20):
        cp["vmem_limit_bytes"] = int(min(2 * est_bytes, 56 << 20))

    kernel = functools.partial(
        _fused_conv3daware_kernel,
        C=C, H=H, w3=w3, K=K, pad=pad, tile_ho=tile_ho, Wout=Wout)

    out = pl.pallas_call(
        kernel,
        out_shape=jax.ShapeDtypeStruct((N, Cout, Hout, Wout), x.dtype),
        grid=(N, Hout // tile_ho),
        in_specs=[
            # full H-padded image of this batch element (constant across the
            # inner H-tile axis -> fetched once per batch element)
            pl.BlockSpec((pl.Squeezed(), C, Hp, W), lambda n, t: (n, 0, 0, 0)),
            pl.BlockSpec((Cout, K * K * 3 * C), lambda n, t: (0, 0)),
            pl.BlockSpec((Cout, 1), lambda n, t: (0, 0)),
        ],
        out_specs=pl.BlockSpec((pl.Squeezed(), Cout, tile_ho, Wout),
                               lambda n, t: (n, 0, t, 0)),
        compiler_params=pltpu.CompilerParams(**cp),
    )(xpad, w_mat, b_col)
    return out


# ---------------------------------------------------------------------------
# Pure-JAX reference (mirrors the PyTorch module) for the correctness check
# ---------------------------------------------------------------------------
def _reference_forward(x, weight, bias, stride, padding):
    N, C, H, W = x.shape
    w3 = W // 3
    xy, yz, xz = x[..., :w3], x[..., w3:2 * w3], x[..., 2 * w3:]

    def mw(v):
        return jnp.broadcast_to(jnp.mean(v, axis=3, keepdims=True), v.shape)

    def mh(v):
        return jnp.broadcast_to(jnp.mean(v, axis=2, keepdims=True), v.shape)

    xy_a = jnp.concatenate([xy, mw(yz), mw(xz)], axis=1)
    yz_a = jnp.concatenate([yz, mh(xy), mh(xz)], axis=1)
    xz_a = jnp.concatenate([xz, mw(xy), mh(yz)], axis=1)
    tri = jnp.concatenate([xy_a, yz_a, xz_a], axis=3)
    out = lax.conv_general_dilated(
        tri, weight, (stride, stride),
        ((padding, padding), (padding, padding)),
        dimension_numbers=("NCHW", "OIHW", "NCHW"))
    return out + bias[None, :, None, None]


if __name__ == "__main__":
    # Small shapes consistent with the module (rollout mode: W = 3 * w3).
    N, Cin, H, w3 = 2, 4, 16, 16
    W = 3 * w3
    Cout, K = 8, 3

    key = jax.random.PRNGKey(0)
    kx, kw, kb = jax.random.split(key, 3)
    x = jax.random.normal(kx, (N, Cin, H, W), jnp.float32)
    # Conv2d(in_channels*3, out_channels, K, padding=1) parameters.
    weight = 0.1 * jax.random.normal(kw, (Cout, 3 * Cin, K, K), jnp.float32)
    bias = 0.1 * jax.random.normal(kb, (Cout,), jnp.float32)

    out = conv3d_aware_dmtet_rollout(x, weight, bias, stride=1, padding=1)
    out = jax.block_until_ready(out)

    ref = _reference_forward(x, weight, bias, stride=1, padding=1)
    assert out.shape == (N, Cout, H, W), out.shape
    err = float(jnp.max(jnp.abs(out - ref)))
    assert err < 2e-4, err
    print("KERNEL_OK")
</pallas_src>

<mosaic_0001>
module attributes {stable_mosaic.version = 11 : i64} {
  func.func @_fused_conv3daware_kernel(%arg0: i32, %arg1: i32, %arg2: memref<1x4x18x48xf32, #tpu.memory_space<vmem>>, %arg3: memref<8x108xf32, #tpu.memory_space<vmem>>, %arg4: memref<8x1xf32, #tpu.memory_space<vmem>>, %arg5: memref<1x8x8x48xf32, #tpu.memory_space<vmem>>) attributes {dimension_semantics = [#tpu.dimension_semantics<parallel>, #tpu.dimension_semantics<parallel>], iteration_bounds = array<i64: 2, 2>, scalar_prefetch = 0 : i64, scratch_operands = 0 : i64, tpu.core_type = #tpu.core_type<tc>, window_params = [{transform_indices = @transform_0, window_bounds = array<i64: 1, 4, 18, 48>}, {pipeline_mode = #tpu.pipeline_mode<synchronous>, transform_indices = @transform_1, window_bounds = array<i64: 8, 108>}, {pipeline_mode = #tpu.pipeline_mode<synchronous>, transform_indices = @transform_2, window_bounds = array<i64: 8, 1>}, {transform_indices = @transform_3, window_bounds = array<i64: 1, 8, 8, 48>}]} {
    %c8_i32 = arith.constant 8 : i32
    %0 = arith.muli %arg1, %c8_i32 : i32
    %1 = tpu.assume_multiple %0, 8 : i32
    %c0 = arith.constant 0 : index
    %c0_0 = arith.constant 0 : index
    %c0_1 = arith.constant 0 : index
    %c0_2 = arith.constant 0 : index
    %2 = vector.load %arg2[%c0, %c0_0, %c0_1, %c0_2] : memref<1x4x18x48xf32, #tpu.memory_space<vmem>>, vector<1x4x18x48xf32>
    %3 = vector.shape_cast %2 : vector<1x4x18x48xf32> to vector<4x18x48xf32>
    %4 = vector.extract_strided_slice %3 {offsets = [0, 0, 0], sizes = [4, 18, 16], strides = [1, 1, 1]} : vector<4x18x48xf32> to vector<4x18x16xf32>
    %cst = arith.constant dense<0.000000e+00> : vector<4x16xf32>
    %5 = vector.multi_reduction <add>, %4, %cst [1] : vector<4x18x16xf32> to vector<4x16xf32>
    %6 = vector.shape_cast %5 : vector<4x16xf32> to vector<4x1x16xf32>
    %cst_3 = arith.constant 6.250000e-02 : f32
    %7 = vector.broadcast %cst_3 : f32 to vector<4x1x16xf32>
    %8 = arith.mulf %6, %7 : vector<4x1x16xf32>
    %9 = vector.extract_strided_slice %3 {offsets = [0, 0, 16], sizes = [4, 18, 16], strides = [1, 1, 1]} : vector<4x18x48xf32> to vector<4x18x16xf32>
    %cst_4 = arith.constant dense<0.000000e+00> : vector<4x16xf32>
    %10 = vector.multi_reduction <add>, %9, %cst_4 [1] : vector<4x18x16xf32> to vector<4x16xf32>
    %11 = vector.shape_cast %10 : vector<4x16xf32> to vector<4x1x16xf32>
    %cst_5 = arith.constant 6.250000e-02 : f32
    %12 = vector.broadcast %cst_5 : f32 to vector<4x1x16xf32>
    %13 = arith.mulf %11, %12 : vector<4x1x16xf32>
    %14 = vector.extract_strided_slice %3 {offsets = [0, 0, 32], sizes = [4, 18, 16], strides = [1, 1, 1]} : vector<4x18x48xf32> to vector<4x18x16xf32>
    %cst_6 = arith.constant dense<0.000000e+00> : vector<4x16xf32>
    %15 = vector.multi_reduction <add>, %14, %cst_6 [1] : vector<4x18x16xf32> to vector<4x16xf32>
    %16 = vector.shape_cast %15 : vector<4x16xf32> to vector<4x1x16xf32>
    %cst_7 = arith.constant 6.250000e-02 : f32
    %17 = vector.broadcast %cst_7 : f32 to vector<4x1x16xf32>
    %18 = arith.mulf %16, %17 : vector<4x1x16xf32>
    %c0_8 = arith.constant 0 : index
    %c0_9 = arith.constant 0 : index
    %19 = arith.index_cast %1 : i32 to index
    %c0_10 = arith.constant 0 : index
    %20 = vector.load %arg2[%c0_8, %c0_9, %19, %c0_10] : memref<1x4x18x48xf32, #tpu.memory_space<vmem>>, vector<1x4x10x48xf32>
    %21 = vector.shape_cast %20 : vector<1x4x10x48xf32> to vector<4x10x48xf32>
    %22 = vector.extract_strided_slice %21 {offsets = [0, 0, 0], sizes = [4, 10, 16], strides = [1, 1, 1]} : vector<4x10x48xf32> to vector<4x10x16xf32>
    %cst_11 = arith.constant dense<0.000000e+00> : vector<4x10xf32>
    %23 = vector.multi_reduction <add>, %22, %cst_11 [2] : vector<4x10x16xf32> to vector<4x10xf32>
    %24 = vector.shape_cast %23 : vector<4x10xf32> to vector<4x10x1xf32>
    %cst_12 = arith.constant 1.600000e+01 : f32
    %25 = vector.broadcast %cst_12 : f32 to vector<4x10x1xf32>
    %26 = arith.divf %24, %25 : vector<4x10x1xf32>
    %27 = vector.extract_strided_slice %21 {offsets = [0, 0, 16], sizes = [4, 10, 16], strides = [1, 1, 1]} : vector<4x10x48xf32> to vector<4x10x16xf32>
    %cst_13 = arith.constant dense<0.000000e+00> : vector<4x10xf32>
    %28 = vector.multi_reduction <add>, %27, %cst_13 [2] : vector<4x10x16xf32> to vector<4x10xf32>
    %29 = vector.shape_cast %28 : vector<4x10xf32> to vector<4x10x1xf32>
    %cst_14 = arith.constant 1.600000e+01 : f32
    %30 = vector.broadcast %cst_14 : f32 to vector<4x10x1xf32>
    %31 = arith.divf %29, %30 : vector<4x10x1xf32>
    %32 = vector.extract_strided_slice %21 {offsets = [0, 0, 32], sizes = [4, 10, 16], strides = [1, 1, 1]} : vector<4x10x48xf32> to vector<4x10x16xf32>
    %cst_15 = arith.constant dense<0.000000e+00> : vector<4x10xf32>
    %33 = vector.multi_reduction <add>, %32, %cst_15 [2] : vector<4x10x16xf32> to vector<4x10xf32>
    %34 = vector.shape_cast %33 : vector<4x10xf32> to vector<4x10x1xf32>
    %cst_16 = arith.constant 1.600000e+01 : f32
    %35 = vector.broadcast %cst_16 : f32 to vector<4x10x1xf32>
    %36 = arith.divf %34, %35 : vector<4x10x1xf32>
    %37 = tpu.iota {dimensions = array<i32: 1>} : vector<1x10x1xi32>
    %38 = vector.broadcast %1 : i32 to vector<1x10x1xi32>
    %39 = arith.addi %37, %38 : vector<1x10x1xi32>
    %c1_i32 = arith.constant 1 : i32
    %40 = vector.broadcast %c1_i32 : i32 to vector<1x10x1xi32>
    %41 = arith.cmpi sge, %39, %40 : vector<1x10x1xi32>
    %c17_i32 = arith.constant 17 : i32
    %42 = vector.broadcast %c17_i32 : i32 to vector<1x10x1xi32>
    %43 = arith.cmpi slt, %39, %42 : vector<1x10x1xi32>
    %44 = arith.andi %41, %43 : vector<1x10x1xi1>
    %45 = arith.extui %44 : vector<1x10x1xi1> to vector<1x10x1xi32>
    %46 = arith.sitofp %45 : vector<1x10x1xi32> to vector<1x10x1xf32>
    %47 = vector.shape_cast %31 : vector<4x10x1xf32> to vector<4x10x1xf32>
    %48 = vector.broadcast %47 : vector<4x10x1xf32> to vector<4x10x16xf32>
    %49 = vector.shape_cast %8 : vector<4x1x16xf32> to vector<4x1x16xf32>
    %50 = vector.broadcast %49 : vector<4x1x16xf32> to vector<4x10x16xf32>
    %51 = vector.broadcast %46 : vector<1x10x1xf32> to vector<4x10x16xf32>
    %52 = arith.mulf %50, %51 : vector<4x10x16xf32>
    %53 = vector.shape_cast %26 : vector<4x10x1xf32> to vector<4x10x1xf32>
    %54 = vector.broadcast %53 : vector<4x10x1xf32> to vector<4x10x16xf32>
    %55 = tpu.concatenate %48, %52, %54 in 2 : vector<4x10x16xf32>, vector<4x10x16xf32>, vector<4x10x16xf32> -> vector<4x10x48xf32>
    %56 = vector.shape_cast %36 : vector<4x10x1xf32> to vector<4x10x1xf32>
    %57 = vector.broadcast %56 : vector<4x10x1xf32> to vector<4x10x16xf32>
    %58 = vector.shape_cast %18 : vector<4x1x16xf32> to vector<4x1x16xf32>
    %59 = vector.broadcast %58 : vector<4x1x16xf32> to vector<4x10x16xf32>
    %60 = vector.broadcast %46 : vector<1x10x1xf32> to vector<4x10x16xf32>
    %61 = arith.mulf %59, %60 : vector<4x10x16xf32>
    %62 = vector.shape_cast %13 : vector<4x1x16xf32> to vector<4x1x16xf32>
    %63 = vector.broadcast %62 : vector<4x1x16xf32> to vector<4x10x16xf32>
    %64 = vector.broadcast %46 : vector<1x10x1xf32> to vector<4x10x16xf32>
    %65 = arith.mulf %63, %64 : vector<4x10x16xf32>
    %66 = tpu.concatenate %57, %61, %65 in 2 : vector<4x10x16xf32>, vector<4x10x16xf32>, vector<4x10x16xf32> -> vector<4x10x48xf32>
    %67 = tpu.concatenate %21, %55, %66 in 0 : vector<4x10x48xf32>, vector<4x10x48xf32>, vector<4x10x48xf32> -> vector<12x10x48xf32>
    %cst_17 = arith.constant 0.000000e+00 : f32
    %68 = vector.broadcast %cst_17 : f32 to vector<12x10x1xf32>
    %69 = tpu.concatenate %68, %67, %68 in 2 : vector<12x10x1xf32>, vector<12x10x48xf32>, vector<12x10x1xf32> -> vector<12x10x50xf32>
    %c0_18 = arith.constant 0 : index
    %c0_19 = arith.constant 0 : index
    %70 = vector.load %arg3[%c0_18, %c0_19] : memref<8x108xf32, #tpu.memory_space<vmem>>, vector<8x108xf32>
    %c0_20 = arith.constant 0 : index
    %c0_21 = arith.constant 0 : index
    %71 = vector.load %arg4[%c0_20, %c0_21] : memref<8x1xf32, #tpu.memory_space<vmem>>, vector<8x1xf32>
    %72 = vector.extract_strided_slice %69 {offsets = [0, 0, 0], sizes = [12, 1, 50], strides = [1, 1, 1]} : vector<12x10x50xf32> to vector<12x1x50xf32>
    %73 = vector.shape_cast %72 : vector<12x1x50xf32> to vector<12x50xf32>
    %74 = vector.extract_strided_slice %73 {offsets = [0, 0], sizes = [12, 48], strides = [1, 1]} : vector<12x50xf32> to vector<12x48xf32>
    %75 = vector.extract_strided_slice %73 {offsets = [0, 1], sizes = [12, 48], strides = [1, 1]} : vector<12x50xf32> to vector<12x48xf32>
    %76 = vector.extract_strided_slice %73 {offsets = [0, 2], sizes = [12, 48], strides = [1, 1]} : vector<12x50xf32> to vector<12x48xf32>
    %77 = vector.extract_strided_slice %69 {offsets = [0, 1, 0], sizes = [12, 1, 50], strides = [1, 1, 1]} : vector<12x10x50xf32> to vector<12x1x50xf32>
    %78 = vector.shape_cast %77 : vector<12x1x50xf32> to vector<12x50xf32>
    %79 = vector.extract_strided_slice %78 {offsets = [0, 0], sizes = [12, 48], strides = [1, 1]} : vector<12x50xf32> to vector<12x48xf32>
    %80 = vector.extract_strided_slice %78 {offsets = [0, 1], sizes = [12, 48], strides = [1, 1]} : vector<12x50xf32> to vector<12x48xf32>
    %81 = vector.extract_strided_slice %78 {offsets = [0, 2], sizes = [12, 48], strides = [1, 1]} : vector<12x50xf32> to vector<12x48xf32>
    %82 = vector.extract_strided_slice %69 {offsets = [0, 2, 0], sizes = [12, 1, 50], strides = [1, 1, 1]} : vector<12x10x50xf32> to vector<12x1x50xf32>
    %83 = vector.shape_cast %82 : vector<12x1x50xf32> to vector<12x50xf32>
    %84 = vector.extract_strided_slice %83 {offsets = [0, 0], sizes = [12, 48], strides = [1, 1]} : vector<12x50xf32> to vector<12x48xf32>
    %85 = vector.extract_strided_slice %83 {offsets = [0, 1], sizes = [12, 48], strides = [1, 1]} : vector<12x50xf32> to vector<12x48xf32>
    %86 = vector.extract_strided_slice %83 {offsets = [0, 2], sizes = [12, 48], strides = [1, 1]} : vector<12x50xf32> to vector<12x48xf32>
    %87 = tpu.concatenate %74, %75, %76, %79, %80, %81, %84, %85, %86 in 0 : vector<12x48xf32>, vector<12x48xf32>, vector<12x48xf32>, vector<12x48xf32>, vector<12x48xf32>, vector<12x48xf32>, vector<12x48xf32>, vector<12x48xf32>, vector<12x48xf32> -> vector<108x48xf32>
    %cst_22 = arith.constant dense<0.000000e+00> : vector<8x48xf32>
    %88 = tpu.matmul %70, %87, %cst_22 {dimension_numbers = #tpu.dot_dimension_numbers<[1], [0], [0], [1], [0, 0, 1, 1], [], []>} : vector<8x108xf32>, vector<108x48xf32>, vector<8x48xf32> -> vector<8x48xf32>
    %89 = vector.broadcast %71 : vector<8x1xf32> to vector<8x48xf32>
    %90 = arith.addf %88, %89 : vector<8x48xf32>
    %c0_23 = arith.constant 0 : index
    %c0_24 = arith.constant 0 : index
    %c0_25 = arith.constant 0 : index
    %c0_26 = arith.constant 0 : index
    %91 = vector.load %arg5[%c0_23, %c0_24, %c0_25, %c0_26] : memref<1x8x8x48xf32, #tpu.memory_space<vmem>>, vector<1x8x1x48xf32>
    %92 = vector.shape_cast %91 : vector<1x8x1x48xf32> to vector<8x48xf32>
    %93 = vector.shape_cast %90 : vector<8x48xf32> to vector<1x8x1x48xf32>
    tpu.vector_store %arg5[%c0_23, %c0_24, %c0_25, %c0_26], %93 {strides = array<i32>} : memref<1x8x8x48xf32, #tpu.memory_space<vmem>>, vector<1x8x1x48xf32>,
    %94 = vector.extract_strided_slice %69 {offsets = [0, 1, 0], sizes = [12, 1, 50], strides = [1, 1, 1]} : vector<12x10x50xf32> to vector<12x1x50xf32>
    %95 = vector.shape_cast %94 : vector<12x1x50xf32> to vector<12x50xf32>
    %96 = vector.extract_strided_slice %95 {offsets = [0, 0], sizes = [12, 48], strides = [1, 1]} : vector<12x50xf32> to vector<12x48xf32>
    %97 = vector.extract_strided_slice %95 {offsets = [0, 1], sizes = [12, 48], strides = [1, 1]} : vector<12x50xf32> to vector<12x48xf32>
    %98 = vector.extract_strided_slice %95 {offsets = [0, 2], sizes = [12, 48], strides = [1, 1]} : vector<12x50xf32> to vector<12x48xf32>
    %99 = vector.extract_strided_slice %69 {offsets = [0, 2, 0], sizes = [12, 1, 50], strides = [1, 1, 1]} : vector<12x10x50xf32> to vector<12x1x50xf32>
    %100 = vector.shape_cast %99 : vector<12x1x50xf32> to vector<12x50xf32>
    %101 = vector.extract_strided_slice %100 {offsets = [0, 0], sizes = [12, 48], strides = [1, 1]} : vector<12x50xf32> to vector<12x48xf32>
    %102 = vector.extract_strided_slice %100 {offsets = [0, 1], sizes = [12, 48], strides = [1, 1]} : vector<12x50xf32> to vector<12x48xf32>
    %103 = vector.extract_strided_slice %100 {offsets = [0, 2], sizes = [12, 48], strides = [1, 1]} : vector<12x50xf32> to vector<12x48xf32>
    %104 = vector.extract_strided_slice %69 {offsets = [0, 3, 0], sizes = [12, 1, 50], strides = [1, 1, 1]} : vector<12x10x50xf32> to vector<12x1x50xf32>
    %105 = vector.shape_cast %104 : vector<12x1x50xf32> to vector<12x50xf32>
    %106 = vector.extract_strided_slice %105 {offsets = [0, 0], sizes = [12, 48], strides = [1, 1]} : vector<12x50xf32> to vector<12x48xf32>
    %107 = vector.extract_strided_slice %105 {offsets = [0, 1], sizes = [12, 48], strides = [1, 1]} : vector<12x50xf32> to vector<12x48xf32>
    %108 = vector.extract_strided_slice %105 {offsets = [0, 2], sizes = [12, 48], strides = [1, 1]} : vector<12x50xf32> to vector<12x48xf32>
    %109 = tpu.concatenate %96, %97, %98, %101, %102, %103, %106, %107, %108 in 0 : vector<12x48xf32>, vector<12x48xf32>, vector<12x48xf32>, vector<12x48xf32>, vector<12x48xf32>, vector<12x48xf32>, vector<12x48xf32>, vector<12x48xf32>, vector<12x48xf32> -> vector<108x48xf32>
    %cst_27 = arith.constant dense<0.000000e+00> : vector<8x48xf32>
    %110 = tpu.matmul %70, %109, %cst_27 {dimension_numbers = #tpu.dot_dimension_numbers<[1], [0], [0], [1], [0, 0, 1, 1], [], []>} : vector<8x108xf32>, vector<108x48xf32>, vector<8x48xf32> -> vector<8x48xf32>
    %111 = vector.broadcast %71 : vector<8x1xf32> to vector<8x48xf32>
    %112 = arith.addf %110, %111 : vector<8x48xf32>
    %c0_28 = arith.constant 0 : index
    %c0_29 = arith.constant 0 : index
    %c1 = arith.constant 1 : index
    %c0_30 = arith.constant 0 : index
    %113 = vector.load %arg5[%c0_28, %c0_29, %c1, %c0_30] : memref<1x8x8x48xf32, #tpu.memory_space<vmem>>, vector<1x8x1x48xf32>
    %114 = vector.shape_cast %113 : vector<1x8x1x48xf32> to vector<8x48xf32>
    %115 = vector.shape_cast %112 : vector<8x48xf32> to vector<1x8x1x48xf32>
    tpu.vector_store %arg5[%c0_28, %c0_29, %c1, %c0_30], %115 {strides = array<i32>} : memref<1x8x8x48xf32, #tpu.memory_space<vmem>>, vector<1x8x1x48xf32>,
    %116 = vector.extract_strided_slice %69 {offsets = [0, 2, 0], sizes = [12, 1, 50], strides = [1, 1, 1]} : vector<12x10x50xf32> to vector<12x1x50xf32>
    %117 = vector.shape_cast %116 : vector<12x1x50xf32> to vector<12x50xf32>
    %118 = vector.extract_strided_slice %117 {offsets = [0, 0], sizes = [12, 48], strides = [1, 1]} : vector<12x50xf32> to vector<12x48xf32>
    %119 = vector.extract_strided_slice %117 {offsets = [0, 1], sizes = [12, 48], strides = [1, 1]} : vector<12x50xf32> to vector<12x48xf32>
    %120 = vector.extract_strided_slice %117 {offsets = [0, 2], sizes = [12, 48], strides = [1, 1]} : vector<12x50xf32> to vector<12x48xf32>
    %121 = vector.extract_strided_slice %69 {offsets = [0, 3, 0], sizes = [12, 1, 50], strides = [1, 1, 1]} : vector<12x10x50xf32> to vector<12x1x50xf32>
    %122 = vector.shape_cast %121 : vector<12x1x50xf32> to vector<12x50xf32>
    %123 = vector.extract_strided_slice %122 {offsets = [0, 0], sizes = [12, 48], strides = [1, 1]} : vector<12x50xf32> to vector<12x48xf32>
    %124 = vector.extract_strided_slice %122 {offsets = [0, 1], sizes = [12, 48], strides = [1, 1]} : vector<12x50xf32> to vector<12x48xf32>
    %125 = vector.extract_strided_slice %122 {offsets = [0, 2], sizes = [12, 48], strides = [1, 1]} : vector<12x50xf32> to vector<12x48xf32>
    %126 = vector.extract_strided_slice %69 {offsets = [0, 4, 0], sizes = [12, 1, 50], strides = [1, 1, 1]} : vector<12x10x50xf32> to vector<12x1x50xf32>
    %127 = vector.shape_cast %126 : vector<12x1x50xf32> to vector<12x50xf32>
    %128 = vector.extract_strided_slice %127 {offsets = [0, 0], sizes = [12, 48], strides = [1, 1]} : vector<12x50xf32> to vector<12x48xf32>
    %129 = vector.extract_strided_slice %127 {offsets = [0, 1], sizes = [12, 48], strides = [1, 1]} : vector<12x50xf32> to vector<12x48xf32>
    %130 = vector.extract_strided_slice %127 {offsets = [0, 2], sizes = [12, 48], strides = [1, 1]} : vector<12x50xf32> to vector<12x48xf32>
    %131 = tpu.concatenate %118, %119, %120, %123, %124, %125, %128, %129, %130 in 0 : vector<12x48xf32>, vector<12x48xf32>, vector<12x48xf32>, vector<12x48xf32>, vector<12x48xf32>, vector<12x48xf32>, vector<12x48xf32>, vector<12x48xf32>, vector<12x48xf32> -> vector<108x48xf32>
    %cst_31 = arith.constant dense<0.000000e+00> : vector<8x48xf32>
    %132 = tpu.matmul %70, %131, %cst_31 {dimension_numbers = #tpu.dot_dimension_numbers<[1], [0], [0], [1], [0, 0, 1, 1], [], []>} : vector<8x108xf32>, vector<108x48xf32>, vector<8x48xf32> -> vector<8x48xf32>
    %133 = vector.broadcast %71 : vector<8x1xf32> to vector<8x48xf32>
    %134 = arith.addf %132, %133 : vector<8x48xf32>
    %c0_32 = arith.constant 0 : index
    %c0_33 = arith.constant 0 : index
    %c2 = arith.constant 2 : index
    %c0_34 = arith.constant 0 : index
    %135 = vector.load %arg5[%c0_32, %c0_33, %c2, %c0_34] : memref<1x8x8x48xf32, #tpu.memory_space<vmem>>, vector<1x8x1x48xf32>
    %136 = vector.shape_cast %135 : vector<1x8x1x48xf32> to vector<8x48xf32>
    %137 = vector.shape_cast %134 : vector<8x48xf32> to vector<1x8x1x48xf32>
    tpu.vector_store %arg5[%c0_32, %c0_33, %c2, %c0_34], %137 {strides = array<i32>} : memref<1x8x8x48xf32, #tpu.memory_space<vmem>>, vector<1x8x1x48xf32>,
    %138 = vector.extract_strided_slice %69 {offsets = [0, 3, 0], sizes = [12, 1, 50], strides = [1, 1, 1]} : vector<12x10x50xf32> to vector<12x1x50xf32>
    %139 = vector.shape_cast %138 : vector<12x1x50xf32> to vector<12x50xf32>
    %140 = vector.extract_strided_slice %139 {offsets = [0, 0], sizes = [12, 48], strides = [1, 1]} : vector<12x50xf32> to vector<12x48xf32>
    %141 = vector.extract_strided_slice %139 {offsets = [0, 1], sizes = [12, 48], strides = [1, 1]} : vector<12x50xf32> to vector<12x48xf32>
    %142 = vector.extract_strided_slice %139 {offsets = [0, 2], sizes = [12, 48], strides = [1, 1]} : vector<12x50xf32> to vector<12x48xf32>
    %143 = vector.extract_strided_slice %69 {offsets = [0, 4, 0], sizes = [12, 1, 50], strides = [1, 1, 1]} : vector<12x10x50xf32> to vector<12x1x50xf32>
    %144 = vector.shape_cast %143 : vector<12x1x50xf32> to vector<12x50xf32>
    %145 = vector.extract_strided_slice %144 {offsets = [0, 0], sizes = [12, 48], strides = [1, 1]} : vector<12x50xf32> to vector<12x48xf32>
    %146 = vector.extract_strided_slice %144 {offsets = [0, 1], sizes = [12, 48], strides = [1, 1]} : vector<12x50xf32> to vector<12x48xf32>
    %147 = vector.extract_strided_slice %144 {offsets = [0, 2], sizes = [12, 48], strides = [1, 1]} : vector<12x50xf32> to vector<12x48xf32>
    %148 = vector.extract_strided_slice %69 {offsets = [0, 5, 0], sizes = [12, 1, 50], strides = [1, 1, 1]} : vector<12x10x50xf32> to vector<12x1x50xf32>
    %149 = vector.shape_cast %148 : vector<12x1x50xf32> to vector<12x50xf32>
    %150 = vector.extract_strided_slice %149 {offsets = [0, 0], sizes = [12, 48], strides = [1, 1]} : vector<12x50xf32> to vector<12x48xf32>
    %151 = vector.extract_strided_slice %149 {offsets = [0, 1], sizes = [12, 48], strides = [1, 1]} : vector<12x50xf32> to vector<12x48xf32>
    %152 = vector.extract_strided_slice %149 {offsets = [0, 2], sizes = [12, 48], strides = [1, 1]} : vector<12x50xf32> to vector<12x48xf32>
    %153 = tpu.concatenate %140, %141, %142, %145, %146, %147, %150, %151, %152 in 0 : vector<12x48xf32>, vector<12x48xf32>, vector<12x48xf32>, vector<12x48xf32>, vector<12x48xf32>, vector<12x48xf32>, vector<12x48xf32>, vector<12x48xf32>, vector<12x48xf32> -> vector<108x48xf32>
    %cst_35 = arith.constant dense<0.000000e+00> : vector<8x48xf32>
    %154 = tpu.matmul %70, %153, %cst_35 {dimension_numbers = #tpu.dot_dimension_numbers<[1], [0], [0], [1], [0, 0, 1, 1], [], []>} : vector<8x108xf32>, vector<108x48xf32>, vector<8x48xf32> -> vector<8x48xf32>
    %155 = vector.broadcast %71 : vector<8x1xf32> to vector<8x48xf32>
    %156 = arith.addf %154, %155 : vector<8x48xf32>
    %c0_36 = arith.constant 0 : index
    %c0_37 = arith.constant 0 : index
    %c3 = arith.constant 3 : index
    %c0_38 = arith.constant 0 : index
    %157 = vector.load %arg5[%c0_36, %c0_37, %c3, %c0_38] : memref<1x8x8x48xf32, #tpu.memory_space<vmem>>, vector<1x8x1x48xf32>
    %158 = vector.shape_cast %157 : vector<1x8x1x48xf32> to vector<8x48xf32>
    %159 = vector.shape_cast %156 : vector<8x48xf32> to vector<1x8x1x48xf32>
    tpu.vector_store %arg5[%c0_36, %c0_37, %c3, %c0_38], %159 {strides = array<i32>} : memref<1x8x8x48xf32, #tpu.memory_space<vmem>>, vector<1x8x1x48xf32>,
    %160 = vector.extract_strided_slice %69 {offsets = [0, 4, 0], sizes = [12, 1, 50], strides = [1, 1, 1]} : vector<12x10x50xf32> to vector<12x1x50xf32>
    %161 = vector.shape_cast %160 : vector<12x1x50xf32> to vector<12x50xf32>
    %162 = vector.extract_strided_slice %161 {offsets = [0, 0], sizes = [12, 48], strides = [1, 1]} : vector<12x50xf32> to vector<12x48xf32>
    %163 = vector.extract_strided_slice %161 {offsets = [0, 1], sizes = [12, 48], strides = [1, 1]} : vector<12x50xf32> to vector<12x48xf32>
    %164 = vector.extract_strided_slice %161 {offsets = [0, 2], sizes = [12, 48], strides = [1, 1]} : vector<12x50xf32> to vector<12x48xf32>
    %165 = vector.extract_strided_slice %69 {offsets = [0, 5, 0], sizes = [12, 1, 50], strides = [1, 1, 1]} : vector<12x10x50xf32> to vector<12x1x50xf32>
    %166 = vector.shape_cast %165 : vector<12x1x50xf32> to vector<12x50xf32>
    %167 = vector.extract_strided_slice %166 {offsets = [0, 0], sizes = [12, 48], strides = [1, 1]} : vector<12x50xf32> to vector<12x48xf32>
    %168 = vector.extract_strided_slice %166 {offsets = [0, 1], sizes = [12, 48], strides = [1, 1]} : vector<12x50xf32> to vector<12x48xf32>
    %169 = vector.extract_strided_slice %166 {offsets = [0, 2], sizes = [12, 48], strides = [1, 1]} : vector<12x50xf32> to vector<12x48xf32>
    %170 = vector.extract_strided_slice %69 {offsets = [0, 6, 0], sizes = [12, 1, 50], strides = [1, 1, 1]} : vector<12x10x50xf32> to vector<12x1x50xf32>
    %171 = vector.shape_cast %170 : vector<12x1x50xf32> to vector<12x50xf32>
    %172 = vector.extract_strided_slice %171 {offsets = [0, 0], sizes = [12, 48], strides = [1, 1]} : vector<12x50xf32> to vector<12x48xf32>
    %173 = vector.extract_strided_slice %171 {offsets = [0, 1], sizes = [12, 48], strides = [1, 1]} : vector<12x50xf32> to vector<12x48xf32>
    %174 = vector.extract_strided_slice %171 {offsets = [0, 2], sizes = [12, 48], strides = [1, 1]} : vector<12x50xf32> to vector<12x48xf32>
    %175 = tpu.concatenate %162, %163, %164, %167, %168, %169, %172, %173, %174 in 0 : vector<12x48xf32>, vector<12x48xf32>, vector<12x48xf32>, vector<12x48xf32>, vector<12x48xf32>, vector<12x48xf32>, vector<12x48xf32>, vector<12x48xf32>, vector<12x48xf32> -> vector<108x48xf32>
    %cst_39 = arith.constant dense<0.000000e+00> : vector<8x48xf32>
    %176 = tpu.matmul %70, %175, %cst_39 {dimension_numbers = #tpu.dot_dimension_numbers<[1], [0], [0], [1], [0, 0, 1, 1], [], []>} : vector<8x108xf32>, vector<108x48xf32>, vector<8x48xf32> -> vector<8x48xf32>
    %177 = vector.broadcast %71 : vector<8x1xf32> to vector<8x48xf32>
    %178 = arith.addf %176, %177 : vector<8x48xf32>
    %c0_40 = arith.constant 0 : index
    %c0_41 = arith.constant 0 : index
    %c4 = arith.constant 4 : index
    %c0_42 = arith.constant 0 : index
    %179 = vector.load %arg5[%c0_40, %c0_41, %c4, %c0_42] : memref<1x8x8x48xf32, #tpu.memory_space<vmem>>, vector<1x8x1x48xf32>
    %180 = vector.shape_cast %179 : vector<1x8x1x48xf32> to vector<8x48xf32>
    %181 = vector.shape_cast %178 : vector<8x48xf32> to vector<1x8x1x48xf32>
    tpu.vector_store %arg5[%c0_40, %c0_41, %c4, %c0_42], %181 {strides = array<i32>} : memref<1x8x8x48xf32, #tpu.memory_space<vmem>>, vector<1x8x1x48xf32>,
    %182 = vector.extract_strided_slice %69 {offsets = [0, 5, 0], sizes = [12, 1, 50], strides = [1, 1, 1]} : vector<12x10x50xf32> to vector<12x1x50xf32>
    %183 = vector.shape_cast %182 : vector<12x1x50xf32> to vector<12x50xf32>
    %184 = vector.extract_strided_slice %183 {offsets = [0, 0], sizes = [12, 48], strides = [1, 1]} : vector<12x50xf32> to vector<12x48xf32>
    %185 = vector.extract_strided_slice %183 {offsets = [0, 1], sizes = [12, 48], strides = [1, 1]} : vector<12x50xf32> to vector<12x48xf32>
    %186 = vector.extract_strided_slice %183 {offsets = [0, 2], sizes = [12, 48], strides = [1, 1]} : vector<12x50xf32> to vector<12x48xf32>
    %187 = vector.extract_strided_slice %69 {offsets = [0, 6, 0], sizes = [12, 1, 50], strides = [1, 1, 1]} : vector<12x10x50xf32> to vector<12x1x50xf32>
    %188 = vector.shape_cast %187 : vector<12x1x50xf32> to vector<12x50xf32>
    %189 = vector.extract_strided_slice %188 {offsets = [0, 0], sizes = [12, 48], strides = [1, 1]} : vector<12x50xf32> to vector<12x48xf32>
    %190 = vector.extract_strided_slice %188 {offsets = [0, 1], sizes = [12, 48], strides = [1, 1]} : vector<12x50xf32> to vector<12x48xf32>
    %191 = vector.extract_strided_slice %188 {offsets = [0, 2], sizes = [12, 48], strides = [1, 1]} : vector<12x50xf32> to vector<12x48xf32>
    %192 = vector.extract_strided_slice %69 {offsets = [0, 7, 0], sizes = [12, 1, 50], strides = [1, 1, 1]} : vector<12x10x50xf32> to vector<12x1x50xf32>
    %193 = vector.shape_cast %192 : vector<12x1x50xf32> to vector<12x50xf32>
    %194 = vector.extract_strided_slice %193 {offsets = [0, 0], sizes = [12, 48], strides = [1, 1]} : vector<12x50xf32> to vector<12x48xf32>
    %195 = vector.extract_strided_slice %193 {offsets = [0, 1], sizes = [12, 48], strides = [1, 1]} : vector<12x50xf32> to vector<12x48xf32>
    %196 = vector.extract_strided_slice %193 {offsets = [0, 2], sizes = [12, 48], strides = [1, 1]} : vector<12x50xf32> to vector<12x48xf32>
    %197 = tpu.concatenate %184, %185, %186, %189, %190, %191, %194, %195, %196 in 0 : vector<12x48xf32>, vector<12x48xf32>, vector<12x48xf32>, vector<12x48xf32>, vector<12x48xf32>, vector<12x48xf32>, vector<12x48xf32>, vector<12x48xf32>, vector<12x48xf32> -> vector<108x48xf32>
    %cst_43 = arith.constant dense<0.000000e+00> : vector<8x48xf32>
    %198 = tpu.matmul %70, %197, %cst_43 {dimension_numbers = #tpu.dot_dimension_numbers<[1], [0], [0], [1], [0, 0, 1, 1], [], []>} : vector<8x108xf32>, vector<108x48xf32>, vector<8x48xf32> -> vector<8x48xf32>
    %199 = vector.broadcast %71 : vector<8x1xf32> to vector<8x48xf32>
    %200 = arith.addf %198, %199 : vector<8x48xf32>
    %c0_44 = arith.constant 0 : index
    %c0_45 = arith.constant 0 : index
    %c5 = arith.constant 5 : index
    %c0_46 = arith.constant 0 : index
    %201 = vector.load %arg5[%c0_44, %c0_45, %c5, %c0_46] : memref<1x8x8x48xf32, #tpu.memory_space<vmem>>, vector<1x8x1x48xf32>
    %202 = vector.shape_cast %201 : vector<1x8x1x48xf32> to vector<8x48xf32>
    %203 = vector.shape_cast %200 : vector<8x48xf32> to vector<1x8x1x48xf32>
    tpu.vector_store %arg5[%c0_44, %c0_45, %c5, %c0_46], %203 {strides = array<i32>} : memref<1x8x8x48xf32, #tpu.memory_space<vmem>>, vector<1x8x1x48xf32>,
    %204 = vector.extract_strided_slice %69 {offsets = [0, 6, 0], sizes = [12, 1, 50], strides = [1, 1, 1]} : vector<12x10x50xf32> to vector<12x1x50xf32>
    %205 = vector.shape_cast %204 : vector<12x1x50xf32> to vector<12x50xf32>
    %206 = vector.extract_strided_slice %205 {offsets = [0, 0], sizes = [12, 48], strides = [1, 1]} : vector<12x50xf32> to vector<12x48xf32>
    %207 = vector.extract_strided_slice %205 {offsets = [0, 1], sizes = [12, 48], strides = [1, 1]} : vector<12x50xf32> to vector<12x48xf32>
    %208 = vector.extract_strided_slice %205 {offsets = [0, 2], sizes = [12, 48], strides = [1, 1]} : vector<12x50xf32> to vector<12x48xf32>
    %209 = vector.extract_strided_slice %69 {offsets = [0, 7, 0], sizes = [12, 1, 50], strides = [1, 1, 1]} : vector<12x10x50xf32> to vector<12x1x50xf32>
    %210 = vector.shape_cast %209 : vector<12x1x50xf32> to vector<12x50xf32>
    %211 = vector.extract_strided_slice %210 {offsets = [0, 0], sizes = [12, 48], strides = [1, 1]} : vector<12x50xf32> to vector<12x48xf32>
    %212 = vector.extract_strided_slice %210 {offsets = [0, 1], sizes = [12, 48], strides = [1, 1]} : vector<12x50xf32> to vector<12x48xf32>
    %213 = vector.extract_strided_slice %210 {offsets = [0, 2], sizes = [12, 48], strides = [1, 1]} : vector<12x50xf32> to vector<12x48xf32>
    %214 = vector.extract_strided_slice %69 {offsets = [0, 8, 0], sizes = [12, 1, 50], strides = [1, 1, 1]} : vector<12x10x50xf32> to vector<12x1x50xf32>
    %215 = vector.shape_cast %214 : vector<12x1x50xf32> to vector<12x50xf32>
    %216 = vector.extract_strided_slice %215 {offsets = [0, 0], sizes = [12, 48], strides = [1, 1]} : vector<12x50xf32> to vector<12x48xf32>
    %217 = vector.extract_strided_slice %215 {offsets = [0, 1], sizes = [12, 48], strides = [1, 1]} : vector<12x50xf32> to vector<12x48xf32>
    %218 = vector.extract_strided_slice %215 {offsets = [0, 2], sizes = [12, 48], strides = [1, 1]} : vector<12x50xf32> to vector<12x48xf32>
    %219 = tpu.concatenate %206, %207, %208, %211, %212, %213, %216, %217, %218 in 0 : vector<12x48xf32>, vector<12x48xf32>, vector<12x48xf32>, vector<12x48xf32>, vector<12x48xf32>, vector<12x48xf32>, vector<12x48xf32>, vector<12x48xf32>, vector<12x48xf32> -> vector<108x48xf32>
    %cst_47 = arith.constant dense<0.000000e+00> : vector<8x48xf32>
    %220 = tpu.matmul %70, %219, %cst_47 {dimension_numbers = #tpu.dot_dimension_numbers<[1], [0], [0], [1], [0, 0, 1, 1], [], []>} : vector<8x108xf32>, vector<108x48xf32>, vector<8x48xf32> -> vector<8x48xf32>
    %221 = vector.broadcast %71 : vector<8x1xf32> to vector<8x48xf32>
    %222 = arith.addf %220, %221 : vector<8x48xf32>
    %c0_48 = arith.constant 0 : index
    %c0_49 = arith.constant 0 : index
    %c6 = arith.constant 6 : index
    %c0_50 = arith.constant 0 : index
    %223 = vector.load %arg5[%c0_48, %c0_49, %c6, %c0_50] : memref<1x8x8x48xf32, #tpu.memory_space<vmem>>, vector<1x8x1x48xf32>
    %224 = vector.shape_cast %223 : vector<1x8x1x48xf32> to vector<8x48xf32>
    %225 = vector.shape_cast %222 : vector<8x48xf32> to vector<1x8x1x48xf32>
    tpu.vector_store %arg5[%c0_48, %c0_49, %c6, %c0_50], %225 {strides = array<i32>} : memref<1x8x8x48xf32, #tpu.memory_space<vmem>>, vector<1x8x1x48xf32>,
    %226 = vector.extract_strided_slice %69 {offsets = [0, 7, 0], sizes = [12, 1, 50], strides = [1, 1, 1]} : vector<12x10x50xf32> to vector<12x1x50xf32>
    %227 = vector.shape_cast %226 : vector<12x1x50xf32> to vector<12x50xf32>
    %228 = vector.extract_strided_slice %227 {offsets = [0, 0], sizes = [12, 48], strides = [1, 1]} : vector<12x50xf32> to vector<12x48xf32>
    %229 = vector.extract_strided_slice %227 {offsets = [0, 1], sizes = [12, 48], strides = [1, 1]} : vector<12x50xf32> to vector<12x48xf32>
    %230 = vector.extract_strided_slice %227 {offsets = [0, 2], sizes = [12, 48], strides = [1, 1]} : vector<12x50xf32> to vector<12x48xf32>
    %231 = vector.extract_strided_slice %69 {offsets = [0, 8, 0], sizes = [12, 1, 50], strides = [1, 1, 1]} : vector<12x10x50xf32> to vector<12x1x50xf32>
    %232 = vector.shape_cast %231 : vector<12x1x50xf32> to vector<12x50xf32>
    %233 = vector.extract_strided_slice %232 {offsets = [0, 0], sizes = [12, 48], strides = [1, 1]} : vector<12x50xf32> to vector<12x48xf32>
    %234 = vector.extract_strided_slice %232 {offsets = [0, 1], sizes = [12, 48], strides = [1, 1]} : vector<12x50xf32> to vector<12x48xf32>
    %235 = vector.extract_strided_slice %232 {offsets = [0, 2], sizes = [12, 48], strides = [1, 1]} : vector<12x50xf32> to vector<12x48xf32>
    %236 = vector.extract_strided_slice %69 {offsets = [0, 9, 0], sizes = [12, 1, 50], strides = [1, 1, 1]} : vector<12x10x50xf32> to vector<12x1x50xf32>
    %237 = vector.shape_cast %236 : vector<12x1x50xf32> to vector<12x50xf32>
    %238 = vector.extract_strided_slice %237 {offsets = [0, 0], sizes = [12, 48], strides = [1, 1]} : vector<12x50xf32> to vector<12x48xf32>
    %239 = vector.extract_strided_slice %237 {offsets = [0, 1], sizes = [12, 48], strides = [1, 1]} : vector<12x50xf32> to vector<12x48xf32>
    %240 = vector.extract_strided_slice %237 {offsets = [0, 2], sizes = [12, 48], strides = [1, 1]} : vector<12x50xf32> to vector<12x48xf32>
    %241 = tpu.concatenate %228, %229, %230, %233, %234, %235, %238, %239, %240 in 0 : vector<12x48xf32>, vector<12x48xf32>, vector<12x48xf32>, vector<12x48xf32>, vector<12x48xf32>, vector<12x48xf32>, vector<12x48xf32>, vector<12x48xf32>, vector<12x48xf32> -> vector<108x48xf32>
    %cst_51 = arith.constant dense<0.000000e+00> : vector<8x48xf32>
    %242 = tpu.matmul %70, %241, %cst_51 {dimension_numbers = #tpu.dot_dimension_numbers<[1], [0], [0], [1], [0, 0, 1, 1], [], []>} : vector<8x108xf32>, vector<108x48xf32>, vector<8x48xf32> -> vector<8x48xf32>
    %243 = vector.broadcast %71 : vector<8x1xf32> to vector<8x48xf32>
    %244 = arith.addf %242, %243 : vector<8x48xf32>
    %c0_52 = arith.constant 0 : index
    %c0_53 = arith.constant 0 : index
    %c7 = arith.constant 7 : index
    %c0_54 = arith.constant 0 : index
    %245 = vector.load %arg5[%c0_52, %c0_53, %c7, %c0_54] : memref<1x8x8x48xf32, #tpu.memory_space<vmem>>, vector<1x8x1x48xf32>
    %246 = vector.shape_cast %245 : vector<1x8x1x48xf32> to vector<8x48xf32>
    %247 = vector.shape_cast %244 : vector<8x48xf32> to vector<1x8x1x48xf32>
    tpu.vector_store %arg5[%c0_52, %c0_53, %c7, %c0_54], %247 {strides = array<i32>} : memref<1x8x8x48xf32, #tpu.memory_space<vmem>>, vector<1x8x1x48xf32>,
    return
  }
  func.func @transform_0(%arg0: i32, %arg1: i32) -> (i32, i32, i32, i32) {
    %c0_i32 = arith.constant 0 : i32
    %c0_i32_0 = arith.constant 0 : i32
    %c0_i32_1 = arith.constant 0 : i32
    %c0_i32_2 = arith.constant 0 : i32
    return %arg0, %c0_i32, %c0_i32_0, %c0_i32_1 : i32, i32, i32, i32
  }
  func.func @transform_1(%arg0: i32, %arg1: i32) -> (i32, i32) {
    %c0_i32 = arith.constant 0 : i32
    %c0_i32_0 = arith.constant 0 : i32
    %c0_i32_1 = arith.constant 0 : i32
    return %c0_i32, %c0_i32_0 : i32, i32
  }
  func.func @transform_2(%arg0: i32, %arg1: i32) -> (i32, i32) {
    %c0_i32 = arith.constant 0 : i32
    %c0_i32_0 = arith.constant 0 : i32
    %c0_i32_1 = arith.constant 0 : i32
    return %c0_i32, %c0_i32_0 : i32, i32
  }
  func.func @transform_3(%arg0: i32, %arg1: i32) -> (i32, i32, i32, i32) {
    %c0_i32 = arith.constant 0 : i32
    %c0_i32_0 = arith.constant 0 : i32
    %c0_i32_1 = arith.constant 0 : i32
    return %arg0, %c0_i32, %arg1, %c0_i32_0 : i32, i32, i32, i32
  }
}

</mosaic_0001>

<llo_original>
// kernel: conv3d_aware_dmtet_rollout.1
$region0: #{conv3d_aware_dmtet_rollout.1}
  #allocation0 [shape = 'u32[]', space=smem, size = 0x4, offset = 0x4, fixed_abs, tag = 'smem constant byte address 0x4 - core index']
  #allocation1 [shape = 'u32[144,128]{1,0:T(1,128)}', space=vmem, size = 0x12000, scoped, tag = 'internal scratch']
  %s0 = inlined_call_operand.vmem [shape: f32[2,4,18,48], index: 0, kind: input, shape index: {}]
  %s1 = inlined_call_operand.vmem [shape: f32[8,108], index: 1, kind: input, shape index: {}]
  %s2 = inlined_call_operand.vmem [shape: f32[8,1], index: 2, kind: input, shape index: {}]
  %s3 = inlined_call_operand.hbm [shape: f32[2,8,16,48], index: 3, kind: output, shape index: {}]
  %s4 = sld [smem:[#allocation0]]
  $region45: #{conv3d_aware_dmtet_rollout.1} parent=0
    _
  %s6 = ssub.s32 1, %s4
  %s7 = scalar_select 0, %s6, %s4
  $region1: #{conv3d_aware_dmtet_rollout.1} parent=0
    #allocation2 [shape = 'u8[65536]{0}', space=vmem, size = 0x10000, scoped, tag = 'output window, operand 0']
    #allocation3 [shape = 's32[2]{0}', space=sflag, size = 0x8, scoped, tag = 'scoped memory for conv3d_aware_dmtet_rollout.1']
    %8 = vsyncpa [#allocation3], 0
    %s9 = scalar_lea.sflag [#allocation3], 1
    %10 = vsyncpa %s9, 0
    loop: start=0, step=1, limit=6
    $region2: #{conv3d_aware_dmtet_rollout.1} parent=1 // loop_pre_header
      _
    $region3: #{conv3d_aware_dmtet_rollout.1} parent=1 // loop_header
      %s12 = sphi 0, %s16
      %p13 = scmp.ge.s32.totalorder %s12, 6
      %s19 = sphi 0, %s31
      %s20 = sphi 0, %s27
      %s21 = sphi 0, %s19
      %s22 = sphi 0, %s20
      %s23 = sphi 0, %s21
      %s24 = sphi 0, %s22
      %s34 = sphi 0, %s36
      %s37 = sphi 0, %s34
      %s38 = sphi 0, %s37
      %s54 = sphi 0, %s38
      %s58 = sphi 0, %s58
      %s60 = sphi 0, %s58
      %s61 = sphi 0, %s60
      %s75 = sphi 0, %s61
      %s79 = sphi 0, %s79
      %s81 = sphi 0, %s79
      %s82 = sphi 0, %s81
      %s96 = sphi 0, %s82
      %s104 = sphi 0, %s106
      %s107 = sphi 0, %s104
      %s108 = sphi 0, %s107
      %s124 = sphi 0, %s108
    $region4: #{conv3d_aware_dmtet_rollout.1} parent=1 // loop_header_branch
      %15 = sbr.rel (%p13) target = $region8
    $region5: #{conv3d_aware_dmtet_rollout.1} parent=1 // loop_body
      %s17 = ssub.s32 %s12, 1
      %s18 = ssub.s32 %s12, 2
      %s25 = sadd.s32 1, %s20
      %p26 = scmp.ge.s32.totalorder %s25, 2
      %s27 = scalar_select %p26, 0, %s25
      %s28 = sadd.s32 1, %s19
      %s29 = scalar_select %p26, %s28, %s19
      %p30 = scmp.ge.s32.totalorder %s29, 2
      %s31 = scalar_select %p30, 0, %s29
      %s32 = ssub.s32 %s19, %s31
      %p33 = scmp.eq.s32.totalorder %s32, 0
      %s35 = sadd.s32 %s34, 1
      %s36 = scalar_select %p33, %s34, %s35
      %p39 = pneg %p33
      %p40 = scmp.eq.s32.totalorder %s12, 3
      %p41 = por %p39, %p40
      %p42 = scmp.ne.s32.totalorder %s34, %s37
      %p43 = scmp.eq.s32.totalorder %s12, 0
      %p44 = por %p42, %p43
      %p45 = scmp.ne.s32.totalorder %s34, %s37
      %p46 = scmp.eq.s32.totalorder %s17, 3
      %p47 = por %p45, %p46
      %p48 = scmp.ne.s32.totalorder %s37, %s38
      %p49 = scmp.eq.s32.totalorder %s17, 0
      %p50 = por %p48, %p49
      %p51 = scmp.ne.s32.totalorder %s37, %s38
      %p52 = scmp.eq.s32.totalorder %s18, 3
      %p53 = por %p51, %p52
      %p55 = scmp.ne.s32.totalorder %s38, %s54
      %p56 = scmp.eq.s32.totalorder %s18, 0
      %p57 = por %p55, %p56
      %s59 = sadd.s32 %s58, 1
      %p62 = scmp.eq.s32.totalorder %s12, 3
      %p63 = scmp.ne.s32.totalorder %s58, %s60
      %p64 = scmp.eq.s32.totalorder %s12, 0
      %p65 = por %p63, %p64
      %p66 = scmp.ne.s32.totalorder %s58, %s60
      %p67 = scmp.eq.s32.totalorder %s17, 3
      %p68 = por %p66, %p67
      %p69 = scmp.ne.s32.totalorder %s60, %s61
      %p70 = scmp.eq.s32.totalorder %s17, 0
      %p71 = por %p69, %p70
      %p72 = scmp.ne.s32.totalorder %s60, %s61
      %p73 = scmp.eq.s32.totalorder %s18, 3
      %p74 = por %p72, %p73
      %p76 = scmp.ne.s32.totalorder %s61, %s75
      %p77 = scmp.eq.s32.totalorder %s18, 0
      %p78 = por %p76, %p77
      %s80 = sadd.s32 %s79, 1
      %p83 = scmp.eq.s32.totalorder %s12, 3
      %p84 = scmp.ne.s32.totalorder %s79, %s81
      %p85 = scmp.eq.s32.totalorder %s12, 0
      %p86 = por %p84, %p85
      %p87 = scmp.ne.s32.totalorder %s79, %s81
      %p88 = scmp.eq.s32.totalorder %s17, 3
      %p89 = por %p87, %p88
      %p90 = scmp.ne.s32.totalorder %s81, %s82
      %p91 = scmp.eq.s32.totalorder %s17, 0
      %p92 = por %p90, %p91
      %p93 = scmp.ne.s32.totalorder %s81, %s82
      %p94 = scmp.eq.s32.totalorder %s18, 3
      %p95 = por %p93, %p94
      %p97 = scmp.ne.s32.totalorder %s82, %s96
      %p98 = scmp.eq.s32.totalorder %s18, 0
      %p99 = por %p97, %p98
      %s100 = ssub.s32 %s19, %s31
      %s101 = ssub.s32 %s20, %s27
      %s102 = sor.u32 %s100, %s101
      %p103 = scmp.eq.s32.totalorder %s102, 0
      %s105 = sadd.s32 %s104, 1
      %s106 = scalar_select %p103, %s104, %s105
      %p109 = pneg %p103
      %p110 = scmp.eq.s32.totalorder %s12, 3
      %p111 = por %p109, %p110
      %p112 = scmp.ne.s32.totalorder %s104, %s107
      %p113 = scmp.eq.s32.totalorder %s12, 0
      %p114 = por %p112, %p113
      %p115 = scmp.ne.s32.totalorder %s104, %s107
      %p116 = scmp.eq.s32.totalorder %s17, 3
      %p117 = por %p115, %p116
      %p118 = scmp.ne.s32.totalorder %s107, %s108
      %p119 = scmp.eq.s32.totalorder %s17, 0
      %p120 = por %p118, %p119
      %p121 = scmp.ne.s32.totalorder %s107, %s108
      %p122 = scmp.eq.s32.totalorder %s18, 3
      %p123 = por %p121, %p122
      %p125 = scmp.ne.s32.totalorder %s108, %s124
      %p126 = scmp.eq.s32.totalorder %s18, 0
      %p127 = por %p125, %p126
      %p128 = scmp.le.s32.totalorder 1, %s12
      %p129 = scmp.lt.s32.totalorder %s12, 5
      %p130 = pnand %p128, %p129
      %p131 = pneg %p130
      // Predicated region
      $region9: #{conv3d_aware_dmtet_rollout.1} parent=5 // pred_check
        _
      $region10: #{conv3d_aware_dmtet_rollout.1} parent=5 // pred_check_branch
        %133 = sbr.rel (%p130) target = $region12
      $region11: #{conv3d_aware_dmtet_rollout.1} parent=5 // pred_region
        %s134 = ssub.s32 %s12, 1
        // Predicated region
        $region13: #{conv3d_aware_dmtet_rollout.1} parent=11 // pred_check
          %p135 = pneg %p71
        $region14: #{conv3d_aware_dmtet_rollout.1} parent=11 // pred_check_branch
          %137 = sbr.rel (%p135) target = $region16
        $region15: #{conv3d_aware_dmtet_rollout.1} parent=11 // pred_region
          _
        $region16: #{conv3d_aware_dmtet_rollout.1} parent=11 // pred_fallthru
          _
        // Predicated region
        $region17: #{conv3d_aware_dmtet_rollout.1} parent=11 // pred_check
          %p138 = pneg %p92
        $region18: #{conv3d_aware_dmtet_rollout.1} parent=11 // pred_check_branch
          %140 = sbr.rel (%p138) target = $region20
        $region19: #{conv3d_aware_dmtet_rollout.1} parent=11 // pred_region
          _
        $region20: #{conv3d_aware_dmtet_rollout.1} parent=11 // pred_fallthru
          _
      $region12: #{conv3d_aware_dmtet_rollout.1} parent=5 // pred_fallthru
        _
      %p141 = scmp.lt.s32.totalorder %s12, 4
      // Predicated region
      $region21: #{conv3d_aware_dmtet_rollout.1} parent=5 // pred_check
        %p142 = pneg %p141
      $region22: #{conv3d_aware_dmtet_rollout.1} parent=5 // pred_check_branch
        %144 = sbr.rel (%p142) target = $region24
      $region23: #{conv3d_aware_dmtet_rollout.1} parent=5 // pred_region
        // Predicated region
        $region25: #{conv3d_aware_dmtet_rollout.1} parent=23 // pred_check
          %p145 = pneg %p44
        $region26: #{conv3d_aware_dmtet_rollout.1} parent=23 // pred_check_branch
          %147 = sbr.rel (%p145) target = $region28
        $region27: #{conv3d_aware_dmtet_rollout.1} parent=23 // pred_region
          %p148 = scmp.lt.s32.totalorder %s19, 1
          %s149 = scalar_select %p148, %s19, 1
          %s150 = smul.addr %s149, 12
          %s151 = smul.addr %s150, 8
          %s152 = scalar_lea.vmem %s0, %s151
        $region28: #{conv3d_aware_dmtet_rollout.1} parent=23 // pred_fallthru
          _
      $region24: #{conv3d_aware_dmtet_rollout.1} parent=5 // pred_fallthru
        _
      %p153 = scmp.le.s32.totalorder 1, %s12
      %p154 = scmp.lt.s32.totalorder %s12, 5
      %p155 = pnand %p153, %p154
      %p156 = pneg %p155
      // Predicated region
      $region29: #{conv3d_aware_dmtet_rollout.1} parent=5 // pred_check
        _
      $region30: #{conv3d_aware_dmtet_rollout.1} parent=5 // pred_check_branch
        %158 = sbr.rel (%p155) target = $region32
      $region31: #{conv3d_aware_dmtet_rollout.1} parent=5 // pred_region
        %s159 = ssub.s32 %s12, 1
        %p160 = scmp.lt.s32.totalorder %s21, 1
        %s161 = scalar_select %p160, %s21, 1
        %s162 = smul.addr %s161, 12
        %s163 = smul.addr %s162, 8
        %s164 = scalar_lea.vmem %s0, %s163
        %p165 = pneg %p50
        %p166 = pneg %p47
        %p167 = pneg %p71
        %p168 = pneg %p68
        %p169 = pneg %p92
        %p170 = pneg %p89
        %p171 = pneg %p120
        %p172 = pneg %p117
        %s173 = sand.u32 %s107, 1
        %s174 = scalar_lea.sflag [#allocation3], %s173
        %s175 = sand.u32 %s107, 1
        %s176 = smul.addr %s175, 64
        %s177 = scalar_lea.vmem [#allocation2], %s176
        %p178 = scmp.lt.s32.totalorder %s21, 1
        %s179 = scalar_select %p178, %s21, 1
        %s180 = smul.addr %s179, 12
        %s181 = smul.addr %s180, 8
        %s182 = scalar_lea.vmem %s0, %s181
        %s183 = smul.u32 %s22, 8
        %v184 = vld [vmem:[%s182] sm:$0xff]
        %v185 = vld [vmem:[%s182 + $0x8] sm:$0xff]
        %v186 = vld [vmem:[%s182 + $0x10] sm:$0x3]
        %v187 = vld [vmem:[%s182 + $0x18] sm:$0xff]
        %v188 = vld [vmem:[%s182 + $0x20] sm:$0xff]
        %v189 = vld [vmem:[%s182 + $0x28] sm:$0x3]
        %v190 = vld [vmem:[%s182 + $0x30] sm:$0xff]
        %v191 = vld [vmem:[%s182 + $0x38] sm:$0xff]
        %v192 = vld [vmem:[%s182 + $0x40] sm:$0x3]
        %v193 = vld [vmem:[%s182 + $0x48] sm:$0xff]
        %v194 = vld [vmem:[%s182 + $0x50] sm:$0xff]
        %v195 = vld [vmem:[%s182 + $0x58] sm:$0x3]
        %vm196 = vcmask 130048
        %v197 = vsel %vm196, %v184, 0.0
        %v198 = vsel %vm196, %v185, 0.0
        %v199 = vadd.f32 %v197, %v198
        %vm200 = vcmask 123904
        %v201 = vsel %vm200, %v186, 0.0
        %v202 = vadd.f32 %v199, %v201
        %v203 = vrot.slane %v202, 4
        %v204 = vadd.f32 %v202, %v203
        %v205 = vrot.slane %v204, 2
        %v206 = vadd.f32 %v204, %v205
        %v207 = vrot.slane %v206, 1
        %v208 = vadd.f32 %v206, %v207
        %v209 = vsel %vm196, %v187, 0.0
        %v210 = vsel %vm196, %v188, 0.0
        %v211 = vadd.f32 %v209, %v210
        %v212 = vsel %vm200, %v189, 0.0
        %v213 = vadd.f32 %v211, %v212
        %v214 = vrot.slane %v213, 4
        %v215 = vadd.f32 %v213, %v214
        %v216 = vrot.slane %v215, 2
        %v217 = vadd.f32 %v215, %v216
        %v218 = vrot.slane %v217, 1
        %v219 = vadd.f32 %v217, %v218
        %v220 = vsel %vm196, %v190, 0.0
        %v221 = vsel %vm196, %v191, 0.0
        %v222 = vadd.f32 %v220, %v221
        %v223 = vsel %vm200, %v192, 0.0
        %v224 = vadd.f32 %v222, %v223
        %v225 = vrot.slane %v224, 4
        %v226 = vadd.f32 %v224, %v225
        %v227 = vrot.slane %v226, 2
        %v228 = vadd.f32 %v226, %v227
        %v229 = vrot.slane %v228, 1
        %v230 = vadd.f32 %v228, %v229
        %v231 = vsel %vm196, %v193, 0.0
        %v232 = vsel %vm196, %v194, 0.0
        %v233 = vadd.f32 %v231, %v232
        %v234 = vsel %vm200, %v195, 0.0
        %v235 = vadd.f32 %v233, %v234
        %v236 = vrot.slane %v235, 4
        %v237 = vadd.f32 %v235, %v236
        %v238 = vrot.slane %v237, 2
        %v239 = vadd.f32 %v237, %v238
        %v240 = vrot.slane %v239, 1
        %v241 = vadd.f32 %v239, %v240
        %v242 = vmul.f32 %v208, 0.0625
        %v243 = vmul.f32 %v219, 0.0625
        %v244 = vmul.f32 %v230, 0.0625
        %v245 = vmul.f32 %v241, 0.0625
        %vm246 = vcmask 261248
        %v247 = vsel %vm246, %v184, 0.0
        %v248 = vsel %vm246, %v185, 0.0
        %v249 = vadd.f32 %v247, %v248
        %vm250 = vcmask 255104
        %v251 = vsel %vm250, %v186, 0.0
        %v252 = vadd.f32 %v249, %v251
        %v253 = vrot.slane %v252, 4
        %v254 = vadd.f32 %v252, %v253
        %v255 = vrot.slane %v254, 2
        %v256 = vadd.f32 %v254, %v255
        %v257 = vrot.slane %v256, 1
        %v258 = vadd.f32 %v256, %v257
        %v259 = vsel %vm246, %v187, 0.0
        %v260 = vsel %vm246, %v188, 0.0
        %v261 = vadd.f32 %v259, %v260
        %v262 = vsel %vm250, %v189, 0.0
        %v263 = vadd.f32 %v261, %v262
        %v264 = vrot.slane %v263, 4
        %v265 = vadd.f32 %v263, %v264
        %v266 = vrot.slane %v265, 2
        %v267 = vadd.f32 %v265, %v266
        %v268 = vrot.slane %v267, 1
        %v269 = vadd.f32 %v267, %v268
        %v270 = vsel %vm246, %v190, 0.0
        %v271 = vsel %vm246, %v191, 0.0
        %v272 = vadd.f32 %v270, %v271
        %v273 = vsel %vm250, %v192, 0.0
        %v274 = vadd.f32 %v272, %v273
        %v275 = vrot.slane %v274, 4
        %v276 = vadd.f32 %v274, %v275
        %v277 = vrot.slane %v276, 2
        %v278 = vadd.f32 %v276, %v277
        %v279 = vrot.slane %v278, 1
        %v280 = vadd.f32 %v278, %v279
        %v281 = vsel %vm246, %v193, 0.0
        %v282 = vsel %vm246, %v194, 0.0
        %v283 = vadd.f32 %v281, %v282
        %v284 = vsel %vm250, %v195, 0.0
        %v285 = vadd.f32 %v283, %v284
        %v286 = vrot.slane %v285, 4
        %v287 = vadd.f32 %v285, %v286
        %v288 = vrot.slane %v287, 2
        %v289 = vadd.f32 %v287, %v288
        %v290 = vrot.slane %v289, 1
        %v291 = vadd.f32 %v289, %v290
        %v292 = vmul.f32 %v258, 0.0625
        %v293 = vmul.f32 %v269, 0.0625
        %v294 = vmul.f32 %v280, 0.0625
        %v295 = vmul.f32 %v291, 0.0625
        %vm296 = vcmask 392448
        %v297 = vsel %vm296, %v184, 0.0
        %v298 = vsel %vm296, %v185, 0.0
        %v299 = vadd.f32 %v297, %v298
        %vm300 = vcmask 386304
        %v301 = vsel %vm300, %v186, 0.0
        %v302 = vadd.f32 %v299, %v301
        %v303 = vrot.slane %v302, 4
        %v304 = vadd.f32 %v302, %v303
        %v305 = vrot.slane %v304, 2
        %v306 = vadd.f32 %v304, %v305
        %v307 = vrot.slane %v306, 1
        %v308 = vadd.f32 %v306, %v307
        %v309 = vsel %vm296, %v187, 0.0
        %v310 = vsel %vm296, %v188, 0.0
        %v311 = vadd.f32 %v309, %v310
        %v312 = vsel %vm300, %v189, 0.0
        %v313 = vadd.f32 %v311, %v312
        %v314 = vrot.slane %v313, 4
        %v315 = vadd.f32 %v313, %v314
        %v316 = vrot.slane %v315, 2
        %v317 = vadd.f32 %v315, %v316
        %v318 = vrot.slane %v317, 1
        %v319 = vadd.f32 %v317, %v318
        %v320 = vsel %vm296, %v190, 0.0
        %v321 = vsel %vm296, %v191, 0.0
        %v322 = vadd.f32 %v320, %v321
        %v323 = vsel %vm300, %v192, 0.0
        %v324 = vadd.f32 %v322, %v323
        %v325 = vrot.slane %v324, 4
        %v326 = vadd.f32 %v324, %v325
        %v327 = vrot.slane %v326, 2
        %v328 = vadd.f32 %v326, %v327
        %v329 = vrot.slane %v328, 1
        %v330 = vadd.f32 %v328, %v329
        %v331 = vsel %vm296, %v193, 0.0
        %v332 = vsel %vm296, %v194, 0.0
        %v333 = vadd.f32 %v331, %v332
        %v334 = vsel %vm300, %v195, 0.0
        %v335 = vadd.f32 %v333, %v334
        %v336 = vrot.slane %v335, 4
        %v337 = vadd.f32 %v335, %v336
        %v338 = vrot.slane %v337, 2
        %v339 = vadd.f32 %v337, %v338
        %v340 = vrot.slane %v339, 1
        %v341 = vadd.f32 %v339, %v340
        %v342 = vmul.f32 %v308, 0.0625
        %v343 = vmul.f32 %v319, 0.0625
        %v344 = vmul.f32 %v330, 0.0625
        %v345 = vmul.f32 %v341, 0.0625
        %s346 = scalar_lea.vmem %s182, %s183
        %v347 = vld [vmem:[%s346] sm:$0xff]
        %v348 = vld [vmem:[%s346 + $0x8] sm:$0x3]
        %v349 = vld [vmem:[%s346 + $0x18] sm:$0xff]
        %v350 = vld [vmem:[%s346 + $0x20] sm:$0x3]
        %v351 = vld [vmem:[%s346 + $0x30] sm:$0xff]
        %v352 = vld [vmem:[%s346 + $0x38] sm:$0x3]
        %v353 = vld [vmem:[%s346 + $0x48] sm:$0xff]
        %v354 = vld [vmem:[%s346 + $0x50] sm:$0x3]
        %v355 = vsel %vm196, %v347, 0.0
        %356 = vadd.xlane.f32.xlu0 %v355
        %v357 = vpop.xlane.xlu0 %356
        %v358 = vsel %vm200, %v348, 0.0
        %359 = vadd.xlane.f32.xlu0 %v358
        %v360 = vpop.xlane.xlu0 %359
        %v361 = vsel %vm196, %v349, 0.0
        %362 = vadd.xlane.f32.xlu0 %v361
        %v363 = vpop.xlane.xlu0 %362
        %v364 = vsel %vm200, %v350, 0.0
        %365 = vadd.xlane.f32.xlu0 %v364
        %v366 = vpop.xlane.xlu0 %365
        %v367 = vsel %vm196, %v351, 0.0
        %368 = vadd.xlane.f32.xlu0 %v367
        %v369 = vpop.xlane.xlu0 %368
        %v370 = vsel %vm200, %v352, 0.0
        %371 = vadd.xlane.f32.xlu0 %v370
        %v372 = vpop.xlane.xlu0 %371
        %v373 = vsel %vm196, %v353, 0.0
        %374 = vadd.xlane.f32.xlu0 %v373
        %v375 = vpop.xlane.xlu0 %374
        %v376 = vsel %vm200, %v354, 0.0
        %377 = vadd.xlane.f32.xlu0 %v376
        %v378 = vpop.xlane.xlu0 %377
        %v379 = vrcp.pop 16.0
        %v380 = vmul.f32 %v357, %v379
        %v381 = vmul.f32 %v360, %v379
        %v382 = vmul.f32 %v363, %v379
        %v383 = vmul.f32 %v366, %v379
        %v384 = vmul.f32 %v369, %v379
        %v385 = vmul.f32 %v372, %v379
        %v386 = vmul.f32 %v375, %v379
        %v387 = vmul.f32 %v378, %v379
        %396 = vrot.lane.b32.xlu0 %v347, 112
        %v397 = vpop.permute.xlu0 %396
        %398 = vrot.lane.b32.xlu0 %v348, 112
        %v399 = vpop.permute.xlu0 %398
        %400 = vrot.lane.b32.xlu0 %v349, 112
        %v401 = vpop.permute.xlu0 %400
        %402 = vrot.lane.b32.xlu0 %v350, 112
        %v403 = vpop.permute.xlu0 %402
        %404 = vrot.lane.b32.xlu0 %v351, 112
        %v405 = vpop.permute.xlu0 %404
        %406 = vrot.lane.b32.xlu0 %v352, 112
        %v407 = vpop.permute.xlu0 %406
        %408 = vrot.lane.b32.xlu0 %v353, 112
        %v409 = vpop.permute.xlu0 %408
        %410 = vrot.lane.b32.xlu0 %v354, 112
        %v411 = vpop.permute.xlu0 %410
        %v420 = vsel %vm196, %v397, 0.0
        %421 = vadd.xlane.f32.xlu0 %v420
        %v422 = vpop.xlane.xlu0 %421
        %v423 = vsel %vm200, %v399, 0.0
        %424 = vadd.xlane.f32.xlu0 %v423
        %v425 = vpop.xlane.xlu0 %424
        %v426 = vsel %vm196, %v401, 0.0
        %427 = vadd.xlane.f32.xlu0 %v426
        %v428 = vpop.xlane.xlu0 %427
        %v429 = vsel %vm200, %v403, 0.0
        %430 = vadd.xlane.f32.xlu0 %v429
        %v431 = vpop.xlane.xlu0 %430
        %v432 = vsel %vm196, %v405, 0.0
        %433 = vadd.xlane.f32.xlu0 %v432
        %v434 = vpop.xlane.xlu0 %433
        %v435 = vsel %vm200, %v407, 0.0
        %436 = vadd.xlane.f32.xlu0 %v435
        %v437 = vpop.xlane.xlu0 %436
        %v438 = vsel %vm196, %v409, 0.0
        %439 = vadd.xlane.f32.xlu0 %v438
        %v440 = vpop.xlane.xlu0 %439
        %v441 = vsel %vm200, %v411, 0.0
        %442 = vadd.xlane.f32.xlu0 %v441
        %v443 = vpop.xlane.xlu0 %442
        %v444 = vmul.f32 %v422, %v379
        %v445 = vmul.f32 %v425, %v379
        %v446 = vmul.f32 %v428, %v379
        %v447 = vmul.f32 %v431, %v379
        %v448 = vmul.f32 %v434, %v379
        %v449 = vmul.f32 %v437, %v379
        %v450 = vmul.f32 %v440, %v379
        %v451 = vmul.f32 %v443, %v379
        %452 = vrot.lane.b32.xlu0 %v347, 96
        %v453 = vpop.permute.xlu0 %452
        %454 = vrot.lane.b32.xlu0 %v348, 96
        %v455 = vpop.permute.xlu0 %454
        %456 = vrot.lane.b32.xlu0 %v349, 96
        %v457 = vpop.permute.xlu0 %456
        %458 = vrot.lane.b32.xlu0 %v350, 96
        %v459 = vpop.permute.xlu0 %458
        %460 = vrot.lane.b32.xlu0 %v351, 96
        %v461 = vpop.permute.xlu0 %460
        %462 = vrot.lane.b32.xlu0 %v352, 96
        %v463 = vpop.permute.xlu0 %462
        %464 = vrot.lane.b32.xlu0 %v353, 96
        %v465 = vpop.permute.xlu0 %464
        %466 = vrot.lane.b32.xlu0 %v354, 96
        %v467 = vpop.permute.xlu0 %466
        %v476 = vsel %vm196, %v453, 0.0
        %477 = vadd.xlane.f32.xlu0 %v476
        %v478 = vpop.xlane.xlu0 %477
        %v479 = vsel %vm200, %v455, 0.0
        %480 = vadd.xlane.f32.xlu0 %v479
        %v481 = vpop.xlane.xlu0 %480
        %v482 = vsel %vm196, %v457, 0.0
        %483 = vadd.xlane.f32.xlu0 %v482
        %v484 = vpop.xlane.xlu0 %483
        %v485 = vsel %vm200, %v459, 0.0
        %486 = vadd.xlane.f32.xlu0 %v485
        %v487 = vpop.xlane.xlu0 %486
        %v488 = vsel %vm196, %v461, 0.0
        %489 = vadd.xlane.f32.xlu0 %v488
        %v490 = vpop.xlane.xlu0 %489
        %v491 = vsel %vm200, %v463, 0.0
        %492 = vadd.xlane.f32.xlu0 %v491
        %v493 = vpop.xlane.xlu0 %492
        %v494 = vsel %vm196, %v465, 0.0
        %495 = vadd.xlane.f32.xlu0 %v494
        %v496 = vpop.xlane.xlu0 %495
        %v497 = vsel %vm200, %v467, 0.0
        %498 = vadd.xlane.f32.xlu0 %v497
        %v499 = vpop.xlane.xlu0 %498
        %v500 = vmul.f32 %v478, %v379
        %v501 = vmul.f32 %v481, %v379
        %v502 = vmul.f32 %v484, %v379
        %v503 = vmul.f32 %v487, %v379
        %v504 = vmul.f32 %v490, %v379
        %v505 = vmul.f32 %v493, %v379
        %v506 = vmul.f32 %v496, %v379
        %v507 = vmul.f32 %v499, %v379
        %v508 = vlaneseq
        %v509 = vshrl.u32 %v508, 7
        %v510 = vadd.s32 %v509, 8
        %v511 = vstv %s183
        %v512 = vadd.s32 %v509, %v511
        %v513 = vadd.s32 %v510, %v511
        %vm514 = vcmp.ge.s32.totalorder %v512, 1
        %vm515 = vcmp.ge.s32.totalorder %v513, 1
        %vm516 = vcmp.lt.s32.totalorder %v512, 17
        %vm517 = vcmp.lt.s32.totalorder %v513, 17
        %vm518 = vmand %vm514, %vm516
        %vm519 = vmand %vm515, %vm517
        %v520 = vsel %vm518, 1, 0
        %v521 = vsel %vm519, 1, 0
        %v522 = vcvt.s32.f32 %v520
        %v523 = vcvt.s32.f32 %v521
        %v524 = vmul.f32 %v242, %v522
        %v525 = vmul.f32 %v242, %v523
        %v526 = vmul.f32 %v243, %v522
        %v527 = vmul.f32 %v243, %v523
        %v528 = vmul.f32 %v244, %v522
        %v529 = vmul.f32 %v244, %v523
        %v530 = vmul.f32 %v245, %v522
        %v531 = vmul.f32 %v245, %v523
        %540 = vrot.lane.b32.xlu0 %v524, 16
        %v541 = vpop.permute.xlu0 %540
        %542 = vrot.lane.b32.xlu0 %v525, 16
        %v543 = vpop.permute.xlu0 %542
        %544 = vrot.lane.b32.xlu0 %v526, 16
        %v545 = vpop.permute.xlu0 %544
        %546 = vrot.lane.b32.xlu0 %v527, 16
        %v547 = vpop.permute.xlu0 %546
        %548 = vrot.lane.b32.xlu0 %v528, 16
        %v549 = vpop.permute.xlu0 %548
        %550 = vrot.lane.b32.xlu0 %v529, 16
        %v551 = vpop.permute.xlu0 %550
        %552 = vrot.lane.b32.xlu0 %v530, 16
        %v553 = vpop.permute.xlu0 %552
        %554 = vrot.lane.b32.xlu0 %v531, 16
        %v555 = vpop.permute.xlu0 %554
        %v564 = vsel %vm196, %v444, %v541
        %v565 = vsel %vm196, %v445, %v543
        %v566 = vsel %vm196, %v446, %v545
        %v567 = vsel %vm196, %v447, %v547
        %v568 = vsel %vm196, %v448, %v549
        %v569 = vsel %vm196, %v449, %v551
        %v570 = vsel %vm196, %v450, %v553
        %v571 = vsel %vm196, %v451, %v555
        %vm572 = vcmask 261120
        %v573 = vsel %vm572, %v564, %v380
        %v574 = vsel %vm572, %v565, %v381
        %v575 = vsel %vm572, %v566, %v382
        %v576 = vsel %vm572, %v567, %v383
        %v577 = vsel %vm572, %v568, %v384
        %v578 = vsel %vm572, %v569, %v385
        %v579 = vsel %vm572, %v570, %v386
        %v580 = vsel %vm572, %v571, %v387
        %v581 = vmul.f32 %v342, %v522
        %v582 = vmul.f32 %v342, %v523
        %v583 = vmul.f32 %v343, %v522
        %v584 = vmul.f32 %v343, %v523
        %v585 = vmul.f32 %v344, %v522
        %v586 = vmul.f32 %v344, %v523
        %v587 = vmul.f32 %v345, %v522
        %v588 = vmul.f32 %v345, %v523
        %v589 = vmul.f32 %v292, %v522
        %v590 = vmul.f32 %v292, %v523
        %v591 = vmul.f32 %v293, %v522
        %v592 = vmul.f32 %v293, %v523
        %v593 = vmul.f32 %v294, %v522
        %v594 = vmul.f32 %v294, %v523
        %v595 = vmul.f32 %v295, %v522
        %v596 = vmul.f32 %v295, %v523
        %605 = vrot.lane.b32.xlu0 %v581, 112
        %v606 = vpop.permute.xlu0 %605
        %607 = vrot.lane.b32.xlu0 %v582, 112
        %v608 = vpop.permute.xlu0 %607
        %609 = vrot.lane.b32.xlu0 %v583, 112
        %v610 = vpop.permute.xlu0 %609
        %611 = vrot.lane.b32.xlu0 %v584, 112
        %v612 = vpop.permute.xlu0 %611
        %613 = vrot.lane.b32.xlu0 %v585, 112
        %v614 = vpop.permute.xlu0 %613
        %615 = vrot.lane.b32.xlu0 %v586, 112
        %v616 = vpop.permute.xlu0 %615
        %617 = vrot.lane.b32.xlu0 %v587, 112
        %v618 = vpop.permute.xlu0 %617
        %619 = vrot.lane.b32.xlu0 %v588, 112
        %v620 = vpop.permute.xlu0 %619
        %637 = vrot.lane.b32.xlu0 %v589, 16
        %v638 = vpop.permute.xlu0 %637
        %639 = vrot.lane.b32.xlu0 %v590, 16
        %v640 = vpop.permute.xlu0 %639
        %641 = vrot.lane.b32.xlu0 %v591, 16
        %v642 = vpop.permute.xlu0 %641
        %643 = vrot.lane.b32.xlu0 %v592, 16
        %v644 = vpop.permute.xlu0 %643
        %645 = vrot.lane.b32.xlu0 %v593, 16
        %v646 = vpop.permute.xlu0 %645
        %647 = vrot.lane.b32.xlu0 %v594, 16
        %v648 = vpop.permute.xlu0 %647
        %649 = vrot.lane.b32.xlu0 %v595, 16
        %v650 = vpop.permute.xlu0 %649
        %651 = vrot.lane.b32.xlu0 %v596, 16
        %v652 = vpop.permute.xlu0 %651
        %v661 = vsel %vm196, %v500, %v606
        %v662 = vsel %vm196, %v501, %v608
        %v663 = vsel %vm196, %v502, %v610
        %v664 = vsel %vm196, %v503, %v612
        %v665 = vsel %vm196, %v504, %v614
        %v666 = vsel %vm196, %v505, %v616
        %v667 = vsel %vm196, %v506, %v618
        %v668 = vsel %vm196, %v507, %v620
        %v669 = vsel %vm572, %v661, %v638
        %v670 = vsel %vm572, %v662, %v640
        %v671 = vsel %vm572, %v663, %v642
        %v672 = vsel %vm572, %v664, %v644
        %v673 = vsel %vm572, %v665, %v646
        %v674 = vsel %vm572, %v666, %v648
        %v675 = vsel %vm572, %v667, %v650
        %v676 = vsel %vm572, %v668, %v652
        %693 = vrot.lane.b32.xlu0 %v347, 1
        %v694 = vpop.permute.xlu0 %693
        %695 = vrot.lane.b32.xlu0 %v348, 1
        %v696 = vpop.permute.xlu0 %695
        %697 = vrot.lane.b32.xlu0 %v349, 1
        %v698 = vpop.permute.xlu0 %697
        %699 = vrot.lane.b32.xlu0 %v350, 1
        %v700 = vpop.permute.xlu0 %699
        %701 = vrot.lane.b32.xlu0 %v351, 1
        %v702 = vpop.permute.xlu0 %701
        %703 = vrot.lane.b32.xlu0 %v352, 1
        %v704 = vpop.permute.xlu0 %703
        %705 = vrot.lane.b32.xlu0 %v353, 1
        %v706 = vpop.permute.xlu0 %705
        %707 = vrot.lane.b32.xlu0 %v354, 1
        %v708 = vpop.permute.xlu0 %707
        %709 = vrot.lane.b32.xlu0 %v573, 1
        %v710 = vpop.permute.xlu0 %709
        %711 = vrot.lane.b32.xlu0 %v574, 1
        %v712 = vpop.permute.xlu0 %711
        %713 = vrot.lane.b32.xlu0 %v575, 1
        %v714 = vpop.permute.xlu0 %713
        %715 = vrot.lane.b32.xlu0 %v576, 1
        %v716 = vpop.permute.xlu0 %715
        %717 = vrot.lane.b32.xlu0 %v577, 1
        %v718 = vpop.permute.xlu0 %717
        %719 = vrot.lane.b32.xlu0 %v578, 1
        %v720 = vpop.permute.xlu0 %719
        %721 = vrot.lane.b32.xlu0 %v579, 1
        %v722 = vpop.permute.xlu0 %721
        %723 = vrot.lane.b32.xlu0 %v580, 1
        %v724 = vpop.permute.xlu0 %723
        %725 = vrot.lane.b32.xlu0 %v669, 1
        %v726 = vpop.permute.xlu0 %725
        %727 = vrot.lane.b32.xlu0 %v670, 1
        %v728 = vpop.permute.xlu0 %727
        %729 = vrot.lane.b32.xlu0 %v671, 1
        %v730 = vpop.permute.xlu0 %729
        %731 = vrot.lane.b32.xlu0 %v672, 1
        %v732 = vpop.permute.xlu0 %731
        %733 = vrot.lane.b32.xlu0 %v673, 1
        %v734 = vpop.permute.xlu0 %733
        %735 = vrot.lane.b32.xlu0 %v674, 1
        %v736 = vpop.permute.xlu0 %735
        %737 = vrot.lane.b32.xlu0 %v675, 1
        %v738 = vpop.permute.xlu0 %737
        %739 = vrot.lane.b32.xlu0 %v676, 1
        %v740 = vpop.permute.xlu0 %739
        %vm765 = vcmask 7168
        %v766 = vsel %vm765, 0.0, %v694
        %v767 = vsel %vm765, 0.0, %v696
        %v768 = vsel %vm765, 0.0, %v698
        %v769 = vsel %vm765, 0.0, %v700
        %v770 = vsel %vm765, 0.0, %v702
        %v771 = vsel %vm765, 0.0, %v704
        %v772 = vsel %vm765, 0.0, %v706
        %v773 = vsel %vm765, 0.0, %v708
        %v774 = vsel %vm765, 0.0, %v710
        %v775 = vsel %vm765, 0.0, %v712
        %v776 = vsel %vm765, 0.0, %v714
        %v777 = vsel %vm765, 0.0, %v716
        %v778 = vsel %vm765, 0.0, %v718
        %v779 = vsel %vm765, 0.0, %v720
        %v780 = vsel %vm765, 0.0, %v722
        %v781 = vsel %vm765, 0.0, %v724
        %v782 = vsel %vm765, 0.0, %v726
        %v783 = vsel %vm765, 0.0, %v728
        %v784 = vsel %vm765, 0.0, %v730
        %v785 = vsel %vm765, 0.0, %v732
        %v786 = vsel %vm765, 0.0, %v734
        %v787 = vsel %vm765, 0.0, %v736
        %v788 = vsel %vm765, 0.0, %v738
        %v789 = vsel %vm765, 0.0, %v740
        %vm790 = vcmask 400384
        %v791 = vsel %vm790, %v766, 0.0
        %v792 = vsel %vm790, %v767, 0.0
        %v793 = vsel %vm790, %v768, 0.0
        %v794 = vsel %vm790, %v769, 0.0
        %v795 = vsel %vm790, %v770, 0.0
        %v796 = vsel %vm790, %v771, 0.0
        %v797 = vsel %vm790, %v772, 0.0
        %v798 = vsel %vm790, %v773, 0.0
        %v799 = vsel %vm790, %v774, 0.0
        %v800 = vsel %vm790, %v775, 0.0
        %v801 = vsel %vm790, %v776, 0.0
        %v802 = vsel %vm790, %v777, 0.0
        %v803 = vsel %vm790, %v778, 0.0
        %v804 = vsel %vm790, %v779, 0.0
        %v805 = vsel %vm790, %v780, 0.0
        %v806 = vsel %vm790, %v781, 0.0
        %v807 = vsel %vm790, %v782, 0.0
        %v808 = vsel %vm790, %v783, 0.0
        %v809 = vsel %vm790, %v784, 0.0
        %v810 = vsel %vm790, %v785, 0.0
        %v811 = vsel %vm790, %v786, 0.0
        %v812 = vsel %vm790, %v787, 0.0
        %v813 = vsel %vm790, %v788, 0.0
        %v814 = vsel %vm790, %v789, 0.0
        %v815 = vld [vmem:[%s1] sm:$0xff]
        %v816 = vld [vmem:[%s2] sm:$0xff]
        %v829 = vrot.slane %v793, 7
        %vm830 = vcmask 1041409
        %v831 = vsel %vm830, %v829, %v791
        %v832 = vrot.slane %v795, 6
        %vm833 = vcmask 1042434
        %v834 = vsel %vm833, %v832, %v831
        %v835 = vrot.slane %v797, 5
        %vm836 = vcmask 1043459
        %v837 = vsel %vm836, %v835, %v834
        %v838 = vrot.slane %v799, 4
        %vm839 = vcmask 1044484
        %v840 = vsel %vm839, %v838, %v837
        %v841 = vrot.slane %v801, 3
        %vm842 = vcmask 1045509
        %v843 = vsel %vm842, %v841, %v840
        %v844 = vrot.slane %v803, 2
        %vm845 = vcmask 1046534
        %v846 = vsel %vm845, %v844, %v843
        %v847 = vrot.slane %v805, 1
        %vm848 = vcmask 1047559
        %v849 = vsel %vm848, %v847, %v846
        %v850 = vrot.slane %v809, 7
        %v851 = vsel %vm830, %v850, %v807
        %v852 = vrot.slane %v811, 6
        %v853 = vsel %vm833, %v852, %v851
        %v854 = vrot.slane %v813, 5
        %v855 = vsel %vm836, %v854, %v853
        %v858 = vrot.slane %v791, 4
        %v859 = vrot.slane %v793, 3
        %v860 = vsel %vm842, %v859, %v858
        %v861 = vrot.slane %v795, 2
        %v862 = vsel %vm845, %v861, %v860
        %v863 = vrot.slane %v797, 1
        %v864 = vsel %vm848, %v863, %v862
        %v865 = vrot.slane %v801, 7
        %v866 = vsel %vm830, %v865, %v799
        %v867 = vrot.slane %v803, 6
        %v868 = vsel %vm833, %v867, %v866
        %v869 = vrot.slane %v805, 5
        %v870 = vsel %vm836, %v869, %v868
        %v871 = vrot.slane %v807, 4
        %v872 = vsel %vm839, %v871, %v870
        %v873 = vrot.slane %v809, 3
        %v874 = vsel %vm842, %v873, %v872
        %v875 = vrot.slane %v811, 2
        %v876 = vsel %vm845, %v875, %v874
        %v877 = vrot.slane %v813, 1
        %v878 = vsel %vm848, %v877, %v876
        %879 = vrot.lane.b32.xlu0 %v864, 127
        %v880 = vpop.permute.xlu0 %879
        %881 = vrot.lane.b32.xlu0 %v878, 127
        %v882 = vpop.permute.xlu0 %881
        %885 = vrot.lane.b32.xlu0 %v849, 126
        %v886 = vpop.permute.xlu0 %885
        %887 = vrot.lane.b32.xlu0 %v855, 126
        %v888 = vpop.permute.xlu0 %887
        %v891 = vrot.slane %v791, 5
        %v892 = vrot.slane %v793, 4
        %v893 = vsel %vm842, %v892, %v891
        %v894 = vrot.slane %v795, 3
        %v895 = vsel %vm845, %v894, %v893
        %v896 = vrot.slane %v797, 2
        %v897 = vsel %vm848, %v896, %v895
        %v898 = vrot.slane %v799, 1
        %v899 = vsel %vm830, %v801, %v898
        %v900 = vrot.slane %v803, 7
        %v901 = vsel %vm833, %v900, %v899
        %v902 = vrot.slane %v805, 6
        %v903 = vsel %vm836, %v902, %v901
        %v904 = vrot.slane %v807, 5
        %v905 = vsel %vm839, %v904, %v903
        %v906 = vrot.slane %v809, 4
        %v907 = vsel %vm842, %v906, %v905
        %v908 = vrot.slane %v811, 3
        %v909 = vsel %vm845, %v908, %v907
        %v910 = vrot.slane %v813, 2
        %v911 = vsel %vm848, %v910, %v909
        %v914 = vrot.slane %v791, 1
        %v915 = vsel %vm830, %v793, %v914
        %v916 = vrot.slane %v795, 7
        %v917 = vsel %vm833, %v916, %v915
        %v918 = vrot.slane %v797, 6
        %v919 = vsel %vm836, %v918, %v917
        %v920 = vrot.slane %v799, 5
        %v921 = vsel %vm839, %v920, %v919
        %v922 = vrot.slane %v801, 4
        %v923 = vsel %vm842, %v922, %v921
        %v924 = vrot.slane %v803, 3
        %v925 = vsel %vm845, %v924, %v923
        %v926 = vrot.slane %v805, 2
        %v927 = vsel %vm848, %v926, %v925
        %v928 = vrot.slane %v807, 1
        %v929 = vsel %vm830, %v809, %v928
        %v930 = vrot.slane %v811, 7
        %v931 = vsel %vm833, %v930, %v929
        %v932 = vrot.slane %v813, 6
        %v933 = vsel %vm836, %v932, %v931
        %934 = vrot.lane.b32.xlu0 %v927, 127
        %v935 = vpop.permute.xlu0 %934
        %936 = vrot.lane.b32.xlu0 %v933, 127
        %v937 = vpop.permute.xlu0 %936
        %940 = vrot.lane.b32.xlu0 %v897, 126
        %v941 = vpop.permute.xlu0 %940
        %942 = vrot.lane.b32.xlu0 %v911, 126
        %v943 = vpop.permute.xlu0 %942
        %v946 = vrot.slane %v791, 2
        %v947 = vrot.slane %v793, 1
        %v948 = vsel %vm830, %v947, %v946
        %v949 = vsel %vm833, %v795, %v948
        %v950 = vrot.slane %v797, 7
        %v951 = vsel %vm836, %v950, %v949
        %v952 = vrot.slane %v799, 6
        %v953 = vsel %vm839, %v952, %v951
        %v954 = vrot.slane %v801, 5
        %v955 = vsel %vm842, %v954, %v953
        %v956 = vrot.slane %v803, 4
        %v957 = vsel %vm845, %v956, %v955
        %v958 = vrot.slane %v805, 3
        %v959 = vsel %vm848, %v958, %v957
        %v960 = vrot.slane %v807, 2
        %v961 = vrot.slane %v809, 1
        %v962 = vsel %vm830, %v961, %v960
        %v963 = vsel %vm833, %v811, %v962
        %v964 = vrot.slane %v813, 7
        %v965 = vsel %vm836, %v964, %v963
        %v968 = vrot.slane %v791, 6
        %v969 = vrot.slane %v793, 5
        %v970 = vsel %vm842, %v969, %v968
        %v971 = vrot.slane %v795, 4
        %v972 = vsel %vm845, %v971, %v970
        %v973 = vrot.slane %v797, 3
        %v974 = vsel %vm848, %v973, %v972
        %v975 = vrot.slane %v799, 2
        %v976 = vrot.slane %v801, 1
        %v977 = vsel %vm830, %v976, %v975
        %v978 = vsel %vm833, %v803, %v977
        %v979 = vrot.slane %v805, 7
        %v980 = vsel %vm836, %v979, %v978
        %v981 = vrot.slane %v807, 6
        %v982 = vsel %vm839, %v981, %v980
        %v983 = vrot.slane %v809, 5
        %v984 = vsel %vm842, %v983, %v982
        %v985 = vrot.slane %v811, 4
        %v986 = vsel %vm845, %v985, %v984
        %v987 = vrot.slane %v813, 3
        %v988 = vsel %vm848, %v987, %v986
        %989 = vrot.lane.b32.xlu0 %v974, 127
        %v990 = vpop.permute.xlu0 %989
        %991 = vrot.lane.b32.xlu0 %v988, 127
        %v992 = vpop.permute.xlu0 %991
        %995 = vrot.lane.b32.xlu0 %v959, 126
        %v996 = vpop.permute.xlu0 %995
        %997 = vrot.lane.b32.xlu0 %v965, 126
        %v998 = vpop.permute.xlu0 %997
        %vm1000 = vcmask 1043456
        %v1001 = vsel %vm1000, %v855, %v880
        %v1002 = vsel %vm1000, %v888, %v897
        %v1003 = vsel %vm1000, %v937, %v941
        %v1004 = vsel %vm1000, %v965, %v990
        %1006 = vset.pattern.permute.xlu0 0
        %1007 = vperm.xlu0 %1006, %v816
        %v1008 = vpop.permute.xlu0 %1007
        %vm1010 = vcmask 883712
        %v1012 = vsel %vm1010, %v815, 0
        %v1014 = vsel %vm1000, %v998, 0
        %1016 = vmatprep.subr.mxu0 0.0
        %1017 = vmatpush1.msra.mxu0 0.0
        %1018 = vmatprep.subr.mxu0 0.0
        %1019 = vmatpush1.msra.mxu0 0.0
        %1020 = vmatprep.subr.mxu0 0.0
        %1021 = vmatpush1.msra.mxu0 %v1014
        %1022 = vmatprep.subr.mxu0 0.0
        %1023 = vmatpush1.msra.mxu0 %v996
        %1024 = vmatprep.subr.mxu0 0.0
        %1025 = vmatpush1.msra.mxu0 %v992
        %1026 = vmatprep.subr.mxu0 0.0
        %1027 = vmatpush1.msra.mxu0 %v1004
        %1028 = vmatprep.subr.mxu0 0.0
        %1029 = vmatpush1.msra.mxu0 %v959
        %1030 = vmatprep.subr.mxu0 0.0
        %1031 = vmatpush1.msra.mxu0 %v943
        %1032 = vmatprep.subr.mxu0 0.0
        %1033 = vmatpush1.msra.mxu0 %v1003
        %1034 = vmatprep.subr.mxu0 0.0
        %1035 = vmatpush1.msra.mxu0 %v935
        %1036 = vmatprep.subr.mxu0 0.0
        %1037 = vmatpush1.msra.mxu0 %v911
        %1038 = vmatprep.subr.mxu0 0.0
        %1039 = vmatpush1.msra.mxu0 %v1002
        %1040 = vmatprep.subr.mxu0 0.0
        %1041 = vmatpush1.msra.mxu0 %v886
        %1042 = vmatprep.subr.mxu0 0.0
        %1043 = vmatpush1.msra.mxu0 %v882
        %1044 = vmatprep.subr.mxu0 0.0
        %1045 = vmatpush1.msra.mxu0 %v1001
        %1046 = vmatprep.subr.mxu0 0.0
        %1047 = vmatpush1.msra.mxu0 %v849
        %1048 = vmatprep.subr.mxu0 0.0
        %1049 = vmatpush2.msra.mxu0 0.0
        %1050 = vmatprep.subr.mxu0 0.0
        %1051 = vmatpush2.msra.mxu0 0.0
        %1052 = vmatprep.subr.mxu0 0.0
        %1053 = vmatpush2.msra.mxu0 0.0
        %1054 = vmatprep.subr.mxu0 0.0
        %1055 = vmatpush2.msra.mxu0 0.0
        %1056 = vmatprep.subr.mxu0 0.0
        %1057 = vmatpush2.msra.mxu0 0.0
        %1058 = vmatprep.subr.mxu0 0.0
        %1059 = vmatpush2.msra.mxu0 0.0
        %1060 = vmatprep.subr.mxu0 0.0
        %1061 = vmatpush2.msra.mxu0 0.0
        %1062 = vmatprep.subr.mxu0 0.0
        %1063 = vmatpush2.msra.mxu0 0.0
        %1064 = vmatprep.subr.mxu0 0.0
        %1065 = vmatpush2.msra.mxu0 0.0
        %1066 = vmatprep.subr.mxu0 0.0
        %1067 = vmatpush2.msra.mxu0 0.0
        %1068 = vmatprep.subr.mxu0 0.0
        %1069 = vmatpush2.msra.mxu0 0.0
        %1070 = vmatprep.subr.mxu0 0.0
        %1071 = vmatpush2.msra.mxu0 0.0
        %1072 = vmatprep.subr.mxu0 0.0
        %1073 = vmatpush2.msra.mxu0 0.0
        %1074 = vmatprep.subr.mxu0 0.0
        %1075 = vmatpush2.msra.mxu0 0.0
        %1076 = vmatprep.subr.mxu0 0.0
        %1077 = vmatpush2.msra.mxu0 0.0
        %1078 = vmatprep.subr.mxu0 0.0
        %1079 = vmatpush2.msra.mxu0 0.0
        %1080 = vmatprep.mubr.f32.mxu0 0.0
        %1081 = vmatmul.mubr.f32.gmra.mxu0 %v1012
        %v1082 = vpop.f32.mrf.mxu0
        %v1083 = vadd.f32 %v1008, %v1082
        %v1084 = vpop.f32.mrf.mxu0
        %1085 = vdwg.mxu0
        %v1087 = vcombine.high %v1083, %v1083
        %v1089 = vunpack.c.l.s4 1966171168
        %v1090 = vunpack.c.0.s8 %v1089
        %v1091 = vlaneseq
        %v1092 = vshrl.u32 %v1091, 7
        %v1093 = vsub.s32 %v1090, %v1092
        %v1094 = vrot.slane %v1083, %v1093
        %v1096 = vunpack.c.l.s4 1966171168
        %v1097 = vunpack.c.0.s8 %v1096
        %v1098 = vlaneseq
        %v1099 = vshrl.u32 %v1098, 7
        %v1100 = vsub.s32 %v1097, %v1099
        %v1101 = vrot.slane %v1087, %v1100
        %v1102 = vcombine.high %v1094, %v1094
        %v1103 = vcombine.high %v1101, %v1101
        %v1105 = vunpack.c.l.s4 1966171168
        %v1106 = vunpack.c.0.s8 %v1105
        %v1107 = vlaneseq
        %v1108 = vshrl.u32 %v1107, 7
        %v1109 = vsub.s32 %v1106, %v1108
        %v1110 = vrot.slane %v1094, %v1109
        %v1112 = vunpack.c.l.s4 1966171168
        %v1113 = vunpack.c.0.s8 %v1112
        %v1114 = vlaneseq
        %v1115 = vshrl.u32 %v1114, 7
        %v1116 = vsub.s32 %v1113, %v1115
        %v1117 = vrot.slane %v1101, %v1116
        %v1119 = vunpack.c.l.s4 1966171168
        %v1120 = vunpack.c.0.s8 %v1119
        %v1121 = vlaneseq
        %v1122 = vshrl.u32 %v1121, 7
        %v1123 = vsub.s32 %v1120, %v1122
        %v1124 = vrot.slane %v1102, %v1123
        %v1126 = vunpack.c.l.s4 1966171168
        %v1127 = vunpack.c.0.s8 %v1126
        %v1128 = vlaneseq
        %v1129 = vshrl.u32 %v1128, 7
        %v1130 = vsub.s32 %v1127, %v1129
        %v1131 = vrot.slane %v1103, %v1130
        %v1132 = vcombine.high %v1110, %v1110
        %v1133 = vcombine.high %v1117, %v1117
        %v1134 = vcombine.high %v1124, %v1124
        %v1135 = vcombine.high %v1131, %v1131
        %vm1144 = vcmask 385024
        %1145 = vst.msk [vmem:[%s177] sm:$0x1] %vm1144, %v1110
        %1146 = vst.msk [vmem:[%s177 + $0x8] sm:$0x1] %vm1144, %v1124
        %1147 = vst.msk [vmem:[%s177 + $0x10] sm:$0x1] %vm1144, %v1132
        %1148 = vst.msk [vmem:[%s177 + $0x18] sm:$0x1] %vm1144, %v1134
        %1149 = vst.msk [vmem:[%s177 + $0x20] sm:$0x1] %vm1144, %v1117
        %1150 = vst.msk [vmem:[%s177 + $0x28] sm:$0x1] %vm1144, %v1131
        %1151 = vst.msk [vmem:[%s177 + $0x30] sm:$0x1] %vm1144, %v1133
        %1152 = vst.msk [vmem:[%s177 + $0x38] sm:$0x1] %vm1144, %v1135
        %1155 = vrot.lane.b32.xlu0 %v897, 127
        %v1156 = vpop.permute.xlu0 %1155
        %1157 = vrot.lane.b32.xlu0 %v911, 127
        %v1158 = vpop.permute.xlu0 %1157
        %1161 = vrot.lane.b32.xlu0 %v927, 126
        %v1162 = vpop.permute.xlu0 %1161
        %1163 = vrot.lane.b32.xlu0 %v933, 126
        %v1164 = vpop.permute.xlu0 %1163
        %1169 = vrot.lane.b32.xlu0 %v959, 127
        %v1170 = vpop.permute.xlu0 %1169
        %1171 = vrot.lane.b32.xlu0 %v965, 127
        %v1172 = vpop.permute.xlu0 %1171
        %1175 = vrot.lane.b32.xlu0 %v974, 126
        %v1176 = vpop.permute.xlu0 %1175
        %1177 = vrot.lane.b32.xlu0 %v988, 126
        %v1178 = vpop.permute.xlu0 %1177
        %v1181 = vrot.slane %v791, 3
        %v1182 = vrot.slane %v793, 2
        %v1183 = vsel %vm830, %v1182, %v1181
        %v1184 = vrot.slane %v795, 1
        %v1185 = vsel %vm833, %v1184, %v1183
        %v1186 = vsel %vm836, %v797, %v1185
        %v1187 = vrot.slane %v799, 7
        %v1188 = vsel %vm839, %v1187, %v1186
        %v1189 = vrot.slane %v801, 6
        %v1190 = vsel %vm842, %v1189, %v1188
        %v1191 = vrot.slane %v803, 5
        %v1192 = vsel %vm845, %v1191, %v1190
        %v1193 = vrot.slane %v805, 4
        %v1194 = vsel %vm848, %v1193, %v1192
        %v1195 = vrot.slane %v807, 3
        %v1196 = vrot.slane %v809, 2
        %v1197 = vsel %vm830, %v1196, %v1195
        %v1198 = vrot.slane %v811, 1
        %v1199 = vsel %vm833, %v1198, %v1197
        %v1200 = vsel %vm836, %v813, %v1199
        %v1203 = vrot.slane %v791, 7
        %v1204 = vrot.slane %v793, 6
        %v1205 = vsel %vm842, %v1204, %v1203
        %v1206 = vrot.slane %v795, 5
        %v1207 = vsel %vm845, %v1206, %v1205
        %v1208 = vrot.slane %v797, 4
        %v1209 = vsel %vm848, %v1208, %v1207
        %v1210 = vrot.slane %v799, 3
        %v1211 = vrot.slane %v801, 2
        %v1212 = vsel %vm830, %v1211, %v1210
        %v1213 = vrot.slane %v803, 1
        %v1214 = vsel %vm833, %v1213, %v1212
        %v1215 = vsel %vm836, %v805, %v1214
        %v1216 = vrot.slane %v807, 7
        %v1217 = vsel %vm839, %v1216, %v1215
        %v1218 = vrot.slane %v809, 6
        %v1219 = vsel %vm842, %v1218, %v1217
        %v1220 = vrot.slane %v811, 5
        %v1221 = vsel %vm845, %v1220, %v1219
        %v1222 = vrot.slane %v813, 4
        %v1223 = vsel %vm848, %v1222, %v1221
        %1224 = vrot.lane.b32.xlu0 %v1209, 127
        %v1225 = vpop.permute.xlu0 %1224
        %1226 = vrot.lane.b32.xlu0 %v1223, 127
        %v1227 = vpop.permute.xlu0 %1226
        %1230 = vrot.lane.b32.xlu0 %v1194, 126
        %v1231 = vpop.permute.xlu0 %1230
        %1232 = vrot.lane.b32.xlu0 %v1200, 126
        %v1233 = vpop.permute.xlu0 %1232
        %v1235 = vsel %vm1000, %v933, %v1156
        %v1236 = vsel %vm1000, %v1164, %v974
        %v1237 = vsel %vm1000, %v1172, %v1176
        %v1238 = vsel %vm1000, %v1200, %v1225
        %v1239 = vsel %vm1000, %v1233, 0
        %1241 = vmatprep.subr.mxu0 0.0
        %1242 = vmatpush1.msra.mxu0 0.0
        %1243 = vmatprep.subr.mxu0 0.0
        %1244 = vmatpush1.msra.mxu0 0.0
        %1245 = vmatprep.subr.mxu0 0.0
        %1246 = vmatpush1.msra.mxu0 %v1239
        %1247 = vmatprep.subr.mxu0 0.0
        %1248 = vmatpush1.msra.mxu0 %v1231
        %1249 = vmatprep.subr.mxu0 0.0
        %1250 = vmatpush1.msra.mxu0 %v1227
        %1251 = vmatprep.subr.mxu0 0.0
        %1252 = vmatpush1.msra.mxu0 %v1238
        %1253 = vmatprep.subr.mxu0 0.0
        %1254 = vmatpush1.msra.mxu0 %v1194
        %1255 = vmatprep.subr.mxu0 0.0
        %1256 = vmatpush1.msra.mxu0 %v1178
        %1257 = vmatprep.subr.mxu0 0.0
        %1258 = vmatpush1.msra.mxu0 %v1237
        %1259 = vmatprep.subr.mxu0 0.0
        %1260 = vmatpush1.msra.mxu0 %v1170
        %1261 = vmatprep.subr.mxu0 0.0
        %1262 = vmatpush1.msra.mxu0 %v988
        %1263 = vmatprep.subr.mxu0 0.0
        %1264 = vmatpush1.msra.mxu0 %v1236
        %1265 = vmatprep.subr.mxu0 0.0
        %1266 = vmatpush1.msra.mxu0 %v1162
        %1267 = vmatprep.subr.mxu0 0.0
        %1268 = vmatpush1.msra.mxu0 %v1158
        %1269 = vmatprep.subr.mxu0 0.0
        %1270 = vmatpush1.msra.mxu0 %v1235
        %1271 = vmatprep.subr.mxu0 0.0
        %1272 = vmatpush1.msra.mxu0 %v927
        %1273 = vmatprep.subr.mxu0 0.0
        %1274 = vmatpush2.msra.mxu0 0.0
        %1275 = vmatprep.subr.mxu0 0.0
        %1276 = vmatpush2.msra.mxu0 0.0
        %1277 = vmatprep.subr.mxu0 0.0
        %1278 = vmatpush2.msra.mxu0 0.0
        %1279 = vmatprep.subr.mxu0 0.0
        %1280 = vmatpush2.msra.mxu0 0.0
        %1281 = vmatprep.subr.mxu0 0.0
        %1282 = vmatpush2.msra.mxu0 0.0
        %1283 = vmatprep.subr.mxu0 0.0
        %1284 = vmatpush2.msra.mxu0 0.0
        %1285 = vmatprep.subr.mxu0 0.0
        %1286 = vmatpush2.msra.mxu0 0.0
        %1287 = vmatprep.subr.mxu0 0.0
        %1288 = vmatpush2.msra.mxu0 0.0
        %1289 = vmatprep.subr.mxu0 0.0
        %1290 = vmatpush2.msra.mxu0 0.0
        %1291 = vmatprep.subr.mxu0 0.0
        %1292 = vmatpush2.msra.mxu0 0.0
        %1293 = vmatprep.subr.mxu0 0.0
        %1294 = vmatpush2.msra.mxu0 0.0
        %1295 = vmatprep.subr.mxu0 0.0
        %1296 = vmatpush2.msra.mxu0 0.0
        %1297 = vmatprep.subr.mxu0 0.0
        %1298 = vmatpush2.msra.mxu0 0.0
        %1299 = vmatprep.subr.mxu0 0.0
        %1300 = vmatpush2.msra.mxu0 0.0
        %1301 = vmatprep.subr.mxu0 0.0
        %1302 = vmatpush2.msra.mxu0 0.0
        %1303 = vmatprep.subr.mxu0 0.0
        %1304 = vmatpush2.msra.mxu0 0.0
        %1305 = vmatprep.mubr.f32.mxu0 0.0
        %1306 = vmatmul.mubr.f32.gmra.mxu0 %v1012
        %v1307 = vpop.f32.mrf.mxu0
        %v1308 = vadd.f32 %v1008, %v1307
        %v1309 = vpop.f32.mrf.mxu0
        %1310 = vdwg.mxu0
        %v1312 = vcombine.high %v1308, %v1308
        %v1314 = vunpack.c.l.s4 1966171168
        %v1315 = vunpack.c.0.s8 %v1314
        %v1316 = vlaneseq
        %v1317 = vshrl.u32 %v1316, 7
        %v1318 = vsub.s32 %v1315, %v1317
        %v1319 = vrot.slane %v1308, %v1318
        %v1321 = vunpack.c.l.s4 1966171168
        %v1322 = vunpack.c.0.s8 %v1321
        %v1323 = vlaneseq
        %v1324 = vshrl.u32 %v1323, 7
        %v1325 = vsub.s32 %v1322, %v1324
        %v1326 = vrot.slane %v1312, %v1325
        %v1327 = vcombine.high %v1319, %v1319
        %v1328 = vcombine.high %v1326, %v1326
        %v1330 = vunpack.c.l.s4 1966171168
        %v1331 = vunpack.c.0.s8 %v1330
        %v1332 = vlaneseq
        %v1333 = vshrl.u32 %v1332, 7
        %v1334 = vsub.s32 %v1331, %v1333
        %v1335 = vrot.slane %v1319, %v1334
        %v1337 = vunpack.c.l.s4 1966171168
        %v1338 = vunpack.c.0.s8 %v1337
        %v1339 = vlaneseq
        %v1340 = vshrl.u32 %v1339, 7
        %v1341 = vsub.s32 %v1338, %v1340
        %v1342 = vrot.slane %v1326, %v1341
        %v1344 = vunpack.c.l.s4 1966171168
        %v1345 = vunpack.c.0.s8 %v1344
        %v1346 = vlaneseq
        %v1347 = vshrl.u32 %v1346, 7
        %v1348 = vsub.s32 %v1345, %v1347
        %v1349 = vrot.slane %v1327, %v1348
        %v1351 = vunpack.c.l.s4 1966171168
        %v1352 = vunpack.c.0.s8 %v1351
        %v1353 = vlaneseq
        %v1354 = vshrl.u32 %v1353, 7
        %v1355 = vsub.s32 %v1352, %v1354
        %v1356 = vrot.slane %v1328, %v1355
        %v1357 = vcombine.high %v1335, %v1335
        %v1358 = vcombine.high %v1342, %v1342
        %v1359 = vcombine.high %v1349, %v1349
        %v1360 = vcombine.high %v1356, %v1356
        %1369 = vst.msk [vmem:[%s177 + $0x1] sm:$0x1] %vm1144, %v1335
        %1370 = vst.msk [vmem:[%s177 + $0x9] sm:$0x1] %vm1144, %v1349
        %1371 = vst.msk [vmem:[%s177 + $0x11] sm:$0x1] %vm1144, %v1357
        %1372 = vst.msk [vmem:[%s177 + $0x19] sm:$0x1] %vm1144, %v1359
        %1373 = vst.msk [vmem:[%s177 + $0x21] sm:$0x1] %vm1144, %v1342
        %1374 = vst.msk [vmem:[%s177 + $0x29] sm:$0x1] %vm1144, %v1356
        %1375 = vst.msk [vmem:[%s177 + $0x31] sm:$0x1] %vm1144, %v1358
        %1376 = vst.msk [vmem:[%s177 + $0x39] sm:$0x1] %vm1144, %v1360
        %1380 = vrot.lane.b32.xlu0 %v1194, 127
        %v1381 = vpop.permute.xlu0 %1380
        %1382 = vrot.lane.b32.xlu0 %v1200, 127
        %v1383 = vpop.permute.xlu0 %1382
        %1386 = vrot.lane.b32.xlu0 %v1209, 126
        %v1387 = vpop.permute.xlu0 %1386
        %1388 = vrot.lane.b32.xlu0 %v1223, 126
        %v1389 = vpop.permute.xlu0 %1388
        %v1392 = vsel %vm830, %v859, %v858
        %v1393 = vsel %vm833, %v861, %v1392
        %v1394 = vsel %vm836, %v863, %v1393
        %v1395 = vsel %vm839, %v799, %v1394
        %v1396 = vsel %vm842, %v865, %v1395
        %v1397 = vsel %vm845, %v867, %v1396
        %v1398 = vsel %vm848, %v869, %v1397
        %v1399 = vsel %vm830, %v873, %v871
        %v1400 = vsel %vm833, %v875, %v1399
        %v1401 = vsel %vm836, %v877, %v1400
        %v1404 = vsel %vm842, %v829, %v791
        %v1405 = vsel %vm845, %v832, %v1404
        %v1406 = vsel %vm848, %v835, %v1405
        %v1407 = vsel %vm830, %v841, %v838
        %v1408 = vsel %vm833, %v844, %v1407
        %v1409 = vsel %vm836, %v847, %v1408
        %v1410 = vsel %vm839, %v807, %v1409
        %v1411 = vsel %vm842, %v850, %v1410
        %v1412 = vsel %vm845, %v852, %v1411
        %v1413 = vsel %vm848, %v854, %v1412
        %1414 = vrot.lane.b32.xlu0 %v1406, 127
        %v1415 = vpop.permute.xlu0 %1414
        %1416 = vrot.lane.b32.xlu0 %v1413, 127
        %v1417 = vpop.permute.xlu0 %1416
        %1420 = vrot.lane.b32.xlu0 %v1398, 126
        %v1421 = vpop.permute.xlu0 %1420
        %1422 = vrot.lane.b32.xlu0 %v1401, 126
        %v1423 = vpop.permute.xlu0 %1422
        %v1425 = vsel %vm1000, %v998, %v1209
        %v1426 = vsel %vm1000, %v1383, %v1387
        %v1427 = vsel %vm1000, %v1401, %v1415
        %v1428 = vsel %vm1000, %v1423, 0
        %1430 = vmatprep.subr.mxu0 0.0
        %1431 = vmatpush1.msra.mxu0 0.0
        %1432 = vmatprep.subr.mxu0 0.0
        %1433 = vmatpush1.msra.mxu0 0.0
        %1434 = vmatprep.subr.mxu0 0.0
        %1435 = vmatpush1.msra.mxu0 %v1428
        %1436 = vmatprep.subr.mxu0 0.0
        %1437 = vmatpush1.msra.mxu0 %v1421
        %1438 = vmatprep.subr.mxu0 0.0
        %1439 = vmatpush1.msra.mxu0 %v1417
        %1440 = vmatprep.subr.mxu0 0.0
        %1441 = vmatpush1.msra.mxu0 %v1427
        %1442 = vmatprep.subr.mxu0 0.0
        %1443 = vmatpush1.msra.mxu0 %v1398
        %1444 = vmatprep.subr.mxu0 0.0
        %1445 = vmatpush1.msra.mxu0 %v1389
        %1446 = vmatprep.subr.mxu0 0.0
        %1447 = vmatpush1.msra.mxu0 %v1426
        %1448 = vmatprep.subr.mxu0 0.0
        %1449 = vmatpush1.msra.mxu0 %v1381
        %1450 = vmatprep.subr.mxu0 0.0
        %1451 = vmatpush1.msra.mxu0 %v1223
        %1452 = vmatprep.subr.mxu0 0.0
        %1453 = vmatpush1.msra.mxu0 %v1425
        %1454 = vmatprep.subr.mxu0 0.0
        %1455 = vmatpush1.msra.mxu0 %v996
        %1456 = vmatprep.subr.mxu0 0.0
        %1457 = vmatpush1.msra.mxu0 %v992
        %1458 = vmatprep.subr.mxu0 0.0
        %1459 = vmatpush1.msra.mxu0 %v1004
        %1460 = vmatprep.subr.mxu0 0.0
        %1461 = vmatpush1.msra.mxu0 %v959
        %1462 = vmatprep.subr.mxu0 0.0
        %1463 = vmatpush2.msra.mxu0 0.0
        %1464 = vmatprep.subr.mxu0 0.0
        %1465 = vmatpush2.msra.mxu0 0.0
        %1466 = vmatprep.subr.mxu0 0.0
        %1467 = vmatpush2.msra.mxu0 0.0
        %1468 = vmatprep.subr.mxu0 0.0
        %1469 = vmatpush2.msra.mxu0 0.0
        %1470 = vmatprep.subr.mxu0 0.0
        %1471 = vmatpush2.msra.mxu0 0.0
        %1472 = vmatprep.subr.mxu0 0.0
        %1473 = vmatpush2.msra.mxu0 0.0
        %1474 = vmatprep.subr.mxu0 0.0
        %1475 = vmatpush2.msra.mxu0 0.0
        %1476 = vmatprep.subr.mxu0 0.0
        %1477 = vmatpush2.msra.mxu0 0.0
        %1478 = vmatprep.subr.mxu0 0.0
        %1479 = vmatpush2.msra.mxu0 0.0
        %1480 = vmatprep.subr.mxu0 0.0
        %1481 = vmatpush2.msra.mxu0 0.0
        %1482 = vmatprep.subr.mxu0 0.0
        %1483 = vmatpush2.msra.mxu0 0.0
        %1484 = vmatprep.subr.mxu0 0.0
        %1485 = vmatpush2.msra.mxu0 0.0
        %1486 = vmatprep.subr.mxu0 0.0
        %1487 = vmatpush2.msra.mxu0 0.0
        %1488 = vmatprep.subr.mxu0 0.0
        %1489 = vmatpush2.msra.mxu0 0.0
        %1490 = vmatprep.subr.mxu0 0.0
        %1491 = vmatpush2.msra.mxu0 0.0
        %1492 = vmatprep.subr.mxu0 0.0
        %1493 = vmatpush2.msra.mxu0 0.0
        %1494 = vmatprep.mubr.f32.mxu0 0.0
        %1495 = vmatmul.mubr.f32.gmra.mxu0 %v1012
        %v1496 = vpop.f32.mrf.mxu0
        %v1497 = vadd.f32 %v1008, %v1496
        %v1498 = vpop.f32.mrf.mxu0
        %1499 = vdwg.mxu0
        %v1501 = vcombine.high %v1497, %v1497
        %v1503 = vunpack.c.l.s4 1966171168
        %v1504 = vunpack.c.0.s8 %v1503
        %v1505 = vlaneseq
        %v1506 = vshrl.u32 %v1505, 7
        %v1507 = vsub.s32 %v1504, %v1506
        %v1508 = vrot.slane %v1497, %v1507
        %v1510 = vunpack.c.l.s4 1966171168
        %v1511 = vunpack.c.0.s8 %v1510
        %v1512 = vlaneseq
        %v1513 = vshrl.u32 %v1512, 7
        %v1514 = vsub.s32 %v1511, %v1513
        %v1515 = vrot.slane %v1501, %v1514
        %v1516 = vcombine.high %v1508, %v1508
        %v1517 = vcombine.high %v1515, %v1515
        %v1519 = vunpack.c.l.s4 1966171168
        %v1520 = vunpack.c.0.s8 %v1519
        %v1521 = vlaneseq
        %v1522 = vshrl.u32 %v1521, 7
        %v1523 = vsub.s32 %v1520, %v1522
        %v1524 = vrot.slane %v1508, %v1523
        %v1526 = vunpack.c.l.s4 1966171168
        %v1527 = vunpack.c.0.s8 %v1526
        %v1528 = vlaneseq
        %v1529 = vshrl.u32 %v1528, 7
        %v1530 = vsub.s32 %v1527, %v1529
        %v1531 = vrot.slane %v1515, %v1530
        %v1533 = vunpack.c.l.s4 1966171168
        %v1534 = vunpack.c.0.s8 %v1533
        %v1535 = vlaneseq
        %v1536 = vshrl.u32 %v1535, 7
        %v1537 = vsub.s32 %v1534, %v1536
        %v1538 = vrot.slane %v1516, %v1537
        %v1540 = vunpack.c.l.s4 1966171168
        %v1541 = vunpack.c.0.s8 %v1540
        %v1542 = vlaneseq
        %v1543 = vshrl.u32 %v1542, 7
        %v1544 = vsub.s32 %v1541, %v1543
        %v1545 = vrot.slane %v1517, %v1544
        %v1546 = vcombine.high %v1524, %v1524
        %v1547 = vcombine.high %v1531, %v1531
        %v1548 = vcombine.high %v1538, %v1538
        %v1549 = vcombine.high %v1545, %v1545
        %1558 = vst.msk [vmem:[%s177 + $0x2] sm:$0x1] %vm1144, %v1524
        %1559 = vst.msk [vmem:[%s177 + $0xa] sm:$0x1] %vm1144, %v1538
        %1560 = vst.msk [vmem:[%s177 + $0x12] sm:$0x1] %vm1144, %v1546
        %1561 = vst.msk [vmem:[%s177 + $0x1a] sm:$0x1] %vm1144, %v1548
        %1562 = vst.msk [vmem:[%s177 + $0x22] sm:$0x1] %vm1144, %v1531
        %1563 = vst.msk [vmem:[%s177 + $0x2a] sm:$0x1] %vm1144, %v1545
        %1564 = vst.msk [vmem:[%s177 + $0x32] sm:$0x1] %vm1144, %v1547
        %1565 = vst.msk [vmem:[%s177 + $0x3a] sm:$0x1] %vm1144, %v1549
        %1569 = vrot.lane.b32.xlu0 %v1398, 127
        %v1570 = vpop.permute.xlu0 %1569
        %1571 = vrot.lane.b32.xlu0 %v1401, 127
        %v1572 = vpop.permute.xlu0 %1571
        %1575 = vrot.lane.b32.xlu0 %v1406, 126
        %v1576 = vpop.permute.xlu0 %1575
        %1577 = vrot.lane.b32.xlu0 %v1413, 126
        %v1578 = vpop.permute.xlu0 %1577
        %v1581 = vsel %vm830, %v892, %v891
        %v1582 = vsel %vm833, %v894, %v1581
        %v1583 = vsel %vm836, %v896, %v1582
        %v1584 = vsel %vm839, %v898, %v1583
        %v1585 = vsel %vm842, %v801, %v1584
        %v1586 = vsel %vm845, %v900, %v1585
        %v1587 = vsel %vm848, %v902, %v1586
        %v1588 = vsel %vm830, %v906, %v904
        %v1589 = vsel %vm833, %v908, %v1588
        %v1590 = vsel %vm836, %v910, %v1589
        %v1593 = vsel %vm842, %v793, %v914
        %v1594 = vsel %vm845, %v916, %v1593
        %v1595 = vsel %vm848, %v918, %v1594
        %v1596 = vsel %vm830, %v922, %v920
        %v1597 = vsel %vm833, %v924, %v1596
        %v1598 = vsel %vm836, %v926, %v1597
        %v1599 = vsel %vm839, %v928, %v1598
        %v1600 = vsel %vm842, %v809, %v1599
        %v1601 = vsel %vm845, %v930, %v1600
        %v1602 = vsel %vm848, %v932, %v1601
        %1603 = vrot.lane.b32.xlu0 %v1595, 127
        %v1604 = vpop.permute.xlu0 %1603
        %1605 = vrot.lane.b32.xlu0 %v1602, 127
        %v1606 = vpop.permute.xlu0 %1605
        %1609 = vrot.lane.b32.xlu0 %v1587, 126
        %v1610 = vpop.permute.xlu0 %1609
        %1611 = vrot.lane.b32.xlu0 %v1590, 126
        %v1612 = vpop.permute.xlu0 %1611
        %v1614 = vsel %vm1000, %v1233, %v1406
        %v1615 = vsel %vm1000, %v1572, %v1576
        %v1616 = vsel %vm1000, %v1590, %v1604
        %v1617 = vsel %vm1000, %v1612, 0
        %1619 = vmatprep.subr.mxu0 0.0
        %1620 = vmatpush1.msra.mxu0 0.0
        %1621 = vmatprep.subr.mxu0 0.0
        %1622 = vmatpush1.msra.mxu0 0.0
        %1623 = vmatprep.subr.mxu0 0.0
        %1624 = vmatpush1.msra.mxu0 %v1617
        %1625 = vmatprep.subr.mxu0 0.0
        %1626 = vmatpush1.msra.mxu0 %v1610
        %1627 = vmatprep.subr.mxu0 0.0
        %1628 = vmatpush1.msra.mxu0 %v1606
        %1629 = vmatprep.subr.mxu0 0.0
        %1630 = vmatpush1.msra.mxu0 %v1616
        %1631 = vmatprep.subr.mxu0 0.0
        %1632 = vmatpush1.msra.mxu0 %v1587
        %1633 = vmatprep.subr.mxu0 0.0
        %1634 = vmatpush1.msra.mxu0 %v1578
        %1635 = vmatprep.subr.mxu0 0.0
        %1636 = vmatpush1.msra.mxu0 %v1615
        %1637 = vmatprep.subr.mxu0 0.0
        %1638 = vmatpush1.msra.mxu0 %v1570
        %1639 = vmatprep.subr.mxu0 0.0
        %1640 = vmatpush1.msra.mxu0 %v1413
        %1641 = vmatprep.subr.mxu0 0.0
        %1642 = vmatpush1.msra.mxu0 %v1614
        %1643 = vmatprep.subr.mxu0 0.0
        %1644 = vmatpush1.msra.mxu0 %v1231
        %1645 = vmatprep.subr.mxu0 0.0
        %1646 = vmatpush1.msra.mxu0 %v1227
        %1647 = vmatprep.subr.mxu0 0.0
        %1648 = vmatpush1.msra.mxu0 %v1238
        %1649 = vmatprep.subr.mxu0 0.0
        %1650 = vmatpush1.msra.mxu0 %v1194
        %1651 = vmatprep.subr.mxu0 0.0
        %1652 = vmatpush2.msra.mxu0 0.0
        %1653 = vmatprep.subr.mxu0 0.0
        %1654 = vmatpush2.msra.mxu0 0.0
        %1655 = vmatprep.subr.mxu0 0.0
        %1656 = vmatpush2.msra.mxu0 0.0
        %1657 = vmatprep.subr.mxu0 0.0
        %1658 = vmatpush2.msra.mxu0 0.0
        %1659 = vmatprep.subr.mxu0 0.0
        %1660 = vmatpush2.msra.mxu0 0.0
        %1661 = vmatprep.subr.mxu0 0.0
        %1662 = vmatpush2.msra.mxu0 0.0
        %1663 = vmatprep.subr.mxu0 0.0
        %1664 = vmatpush2.msra.mxu0 0.0
        %1665 = vmatprep.subr.mxu0 0.0
        %1666 = vmatpush2.msra.mxu0 0.0
        %1667 = vmatprep.subr.mxu0 0.0
        %1668 = vmatpush2.msra.mxu0 0.0
        %1669 = vmatprep.subr.mxu0 0.0
        %1670 = vmatpush2.msra.mxu0 0.0
        %1671 = vmatprep.subr.mxu0 0.0
        %1672 = vmatpush2.msra.mxu0 0.0
        %1673 = vmatprep.subr.mxu0 0.0
        %1674 = vmatpush2.msra.mxu0 0.0
        %1675 = vmatprep.subr.mxu0 0.0
        %1676 = vmatpush2.msra.mxu0 0.0
        %1677 = vmatprep.subr.mxu0 0.0
        %1678 = vmatpush2.msra.mxu0 0.0
        %1679 = vmatprep.subr.mxu0 0.0
        %1680 = vmatpush2.msra.mxu0 0.0
        %1681 = vmatprep.subr.mxu0 0.0
        %1682 = vmatpush2.msra.mxu0 0.0
        %1683 = vmatprep.mubr.f32.mxu0 0.0
        %1684 = vmatmul.mubr.f32.gmra.mxu0 %v1012
        %v1685 = vpop.f32.mrf.mxu0
        %v1686 = vadd.f32 %v1008, %v1685
        %v1687 = vpop.f32.mrf.mxu0
        %1688 = vdwg.mxu0
        %v1690 = vcombine.high %v1686, %v1686
        %v1692 = vunpack.c.l.s4 1966171168
        %v1693 = vunpack.c.0.s8 %v1692
        %v1694 = vlaneseq
        %v1695 = vshrl.u32 %v1694, 7
        %v1696 = vsub.s32 %v1693, %v1695
        %v1697 = vrot.slane %v1686, %v1696
        %v1699 = vunpack.c.l.s4 1966171168
        %v1700 = vunpack.c.0.s8 %v1699
        %v1701 = vlaneseq
        %v1702 = vshrl.u32 %v1701, 7
        %v1703 = vsub.s32 %v1700, %v1702
        %v1704 = vrot.slane %v1690, %v1703
        %v1705 = vcombine.high %v1697, %v1697
        %v1706 = vcombine.high %v1704, %v1704
        %v1708 = vunpack.c.l.s4 1966171168
        %v1709 = vunpack.c.0.s8 %v1708
        %v1710 = vlaneseq
        %v1711 = vshrl.u32 %v1710, 7
        %v1712 = vsub.s32 %v1709, %v1711
        %v1713 = vrot.slane %v1697, %v1712
        %v1715 = vunpack.c.l.s4 1966171168
        %v1716 = vunpack.c.0.s8 %v1715
        %v1717 = vlaneseq
        %v1718 = vshrl.u32 %v1717, 7
        %v1719 = vsub.s32 %v1716, %v1718
        %v1720 = vrot.slane %v1704, %v1719
        %v1722 = vunpack.c.l.s4 1966171168
        %v1723 = vunpack.c.0.s8 %v1722
        %v1724 = vlaneseq
        %v1725 = vshrl.u32 %v1724, 7
        %v1726 = vsub.s32 %v1723, %v1725
        %v1727 = vrot.slane %v1705, %v1726
        %v1729 = vunpack.c.l.s4 1966171168
        %v1730 = vunpack.c.0.s8 %v1729
        %v1731 = vlaneseq
        %v1732 = vshrl.u32 %v1731, 7
        %v1733 = vsub.s32 %v1730, %v1732
        %v1734 = vrot.slane %v1706, %v1733
        %v1735 = vcombine.high %v1713, %v1713
        %v1736 = vcombine.high %v1720, %v1720
        %v1737 = vcombine.high %v1727, %v1727
        %v1738 = vcombine.high %v1734, %v1734
        %1747 = vst.msk [vmem:[%s177 + $0x3] sm:$0x1] %vm1144, %v1713
        %1748 = vst.msk [vmem:[%s177 + $0xb] sm:$0x1] %vm1144, %v1727
        %1749 = vst.msk [vmem:[%s177 + $0x13] sm:$0x1] %vm1144, %v1735
        %1750 = vst.msk [vmem:[%s177 + $0x1b] sm:$0x1] %vm1144, %v1737
        %1751 = vst.msk [vmem:[%s177 + $0x23] sm:$0x1] %vm1144, %v1720
        %1752 = vst.msk [vmem:[%s177 + $0x2b] sm:$0x1] %vm1144, %v1734
        %1753 = vst.msk [vmem:[%s177 + $0x33] sm:$0x1] %vm1144, %v1736
        %1754 = vst.msk [vmem:[%s177 + $0x3b] sm:$0x1] %vm1144, %v1738
        %1758 = vrot.lane.b32.xlu0 %v1587, 127
        %v1759 = vpop.permute.xlu0 %1758
        %1760 = vrot.lane.b32.xlu0 %v1590, 127
        %v1761 = vpop.permute.xlu0 %1760
        %1764 = vrot.lane.b32.xlu0 %v1595, 126
        %v1765 = vpop.permute.xlu0 %1764
        %1766 = vrot.lane.b32.xlu0 %v1602, 126
        %v1767 = vpop.permute.xlu0 %1766
        %v1770 = vsel %vm830, %v969, %v968
        %v1771 = vsel %vm833, %v971, %v1770
        %v1772 = vsel %vm836, %v973, %v1771
        %v1773 = vsel %vm839, %v975, %v1772
        %v1774 = vsel %vm842, %v976, %v1773
        %v1775 = vsel %vm845, %v803, %v1774
        %v1776 = vsel %vm848, %v979, %v1775
        %v1777 = vsel %vm830, %v983, %v981
        %v1778 = vsel %vm833, %v985, %v1777
        %v1779 = vsel %vm836, %v987, %v1778
        %v1782 = vsel %vm842, %v947, %v946
        %v1783 = vsel %vm845, %v795, %v1782
        %v1784 = vsel %vm848, %v950, %v1783
        %v1785 = vsel %vm830, %v954, %v952
        %v1786 = vsel %vm833, %v956, %v1785
        %v1787 = vsel %vm836, %v958, %v1786
        %v1788 = vsel %vm839, %v960, %v1787
        %v1789 = vsel %vm842, %v961, %v1788
        %v1790 = vsel %vm845, %v811, %v1789
        %v1791 = vsel %vm848, %v964, %v1790
        %1792 = vrot.lane.b32.xlu0 %v1784, 127
        %v1793 = vpop.permute.xlu0 %1792
        %1794 = vrot.lane.b32.xlu0 %v1791, 127
        %v1795 = vpop.permute.xlu0 %1794
        %1798 = vrot.lane.b32.xlu0 %v1776, 126
        %v1799 = vpop.permute.xlu0 %1798
        %1800 = vrot.lane.b32.xlu0 %v1779, 126
        %v1801 = vpop.permute.xlu0 %1800
        %v1803 = vsel %vm1000, %v1423, %v1595
        %v1804 = vsel %vm1000, %v1761, %v1765
        %v1805 = vsel %vm1000, %v1779, %v1793
        %v1806 = vsel %vm1000, %v1801, 0
        %1808 = vmatprep.subr.mxu0 0.0
        %1809 = vmatpush1.msra.mxu0 0.0
        %1810 = vmatprep.subr.mxu0 0.0
        %1811 = vmatpush1.msra.mxu0 0.0
        %1812 = vmatprep.subr.mxu0 0.0
        %1813 = vmatpush1.msra.mxu0 %v1806
        %1814 = vmatprep.subr.mxu0 0.0
        %1815 = vmatpush1.msra.mxu0 %v1799
        %1816 = vmatprep.subr.mxu0 0.0
        %1817 = vmatpush1.msra.mxu0 %v1795
        %1818 = vmatprep.subr.mxu0 0.0
        %1819 = vmatpush1.msra.mxu0 %v1805
        %1820 = vmatprep.subr.mxu0 0.0
        %1821 = vmatpush1.msra.mxu0 %v1776
        %1822 = vmatprep.subr.mxu0 0.0
        %1823 = vmatpush1.msra.mxu0 %v1767
        %1824 = vmatprep.subr.mxu0 0.0
        %1825 = vmatpush1.msra.mxu0 %v1804
        %1826 = vmatprep.subr.mxu0 0.0
        %1827 = vmatpush1.msra.mxu0 %v1759
        %1828 = vmatprep.subr.mxu0 0.0
        %1829 = vmatpush1.msra.mxu0 %v1602
        %1830 = vmatprep.subr.mxu0 0.0
        %1831 = vmatpush1.msra.mxu0 %v1803
        %1832 = vmatprep.subr.mxu0 0.0
        %1833 = vmatpush1.msra.mxu0 %v1421
        %1834 = vmatprep.subr.mxu0 0.0
        %1835 = vmatpush1.msra.mxu0 %v1417
        %1836 = vmatprep.subr.mxu0 0.0
        %1837 = vmatpush1.msra.mxu0 %v1427
        %1838 = vmatprep.subr.mxu0 0.0
        %1839 = vmatpush1.msra.mxu0 %v1398
        %1840 = vmatprep.subr.mxu0 0.0
        %1841 = vmatpush2.msra.mxu0 0.0
        %1842 = vmatprep.subr.mxu0 0.0
        %1843 = vmatpush2.msra.mxu0 0.0
        %1844 = vmatprep.subr.mxu0 0.0
        %1845 = vmatpush2.msra.mxu0 0.0
        %1846 = vmatprep.subr.mxu0 0.0
        %1847 = vmatpush2.msra.mxu0 0.0
        %1848 = vmatprep.subr.mxu0 0.0
        %1849 = vmatpush2.msra.mxu0 0.0
        %1850 = vmatprep.subr.mxu0 0.0
        %1851 = vmatpush2.msra.mxu0 0.0
        %1852 = vmatprep.subr.mxu0 0.0
        %1853 = vmatpush2.msra.mxu0 0.0
        %1854 = vmatprep.subr.mxu0 0.0
        %1855 = vmatpush2.msra.mxu0 0.0
        %1856 = vmatprep.subr.mxu0 0.0
        %1857 = vmatpush2.msra.mxu0 0.0
        %1858 = vmatprep.subr.mxu0 0.0
        %1859 = vmatpush2.msra.mxu0 0.0
        %1860 = vmatprep.subr.mxu0 0.0
        %1861 = vmatpush2.msra.mxu0 0.0
        %1862 = vmatprep.subr.mxu0 0.0
        %1863 = vmatpush2.msra.mxu0 0.0
        %1864 = vmatprep.subr.mxu0 0.0
        %1865 = vmatpush2.msra.mxu0 0.0
        %1866 = vmatprep.subr.mxu0 0.0
        %1867 = vmatpush2.msra.mxu0 0.0
        %1868 = vmatprep.subr.mxu0 0.0
        %1869 = vmatpush2.msra.mxu0 0.0
        %1870 = vmatprep.subr.mxu0 0.0
        %1871 = vmatpush2.msra.mxu0 0.0
        %1872 = vmatprep.mubr.f32.mxu0 0.0
        %1873 = vmatmul.mubr.f32.gmra.mxu0 %v1012
        %v1874 = vpop.f32.mrf.mxu0
        %v1875 = vadd.f32 %v1008, %v1874
        %v1876 = vpop.f32.mrf.mxu0
        %1877 = vdwg.mxu0
        %v1879 = vcombine.high %v1875, %v1875
        %v1881 = vunpack.c.l.s4 1966171168
        %v1882 = vunpack.c.0.s8 %v1881
        %v1883 = vlaneseq
        %v1884 = vshrl.u32 %v1883, 7
        %v1885 = vsub.s32 %v1882, %v1884
        %v1886 = vrot.slane %v1875, %v1885
        %v1888 = vunpack.c.l.s4 1966171168
        %v1889 = vunpack.c.0.s8 %v1888
        %v1890 = vlaneseq
        %v1891 = vshrl.u32 %v1890, 7
        %v1892 = vsub.s32 %v1889, %v1891
        %v1893 = vrot.slane %v1879, %v1892
        %v1894 = vcombine.high %v1886, %v1886
        %v1895 = vcombine.high %v1893, %v1893
        %v1897 = vunpack.c.l.s4 1966171168
        %v1898 = vunpack.c.0.s8 %v1897
        %v1899 = vlaneseq
        %v1900 = vshrl.u32 %v1899, 7
        %v1901 = vsub.s32 %v1898, %v1900
        %v1902 = vrot.slane %v1886, %v1901
        %v1904 = vunpack.c.l.s4 1966171168
        %v1905 = vunpack.c.0.s8 %v1904
        %v1906 = vlaneseq
        %v1907 = vshrl.u32 %v1906, 7
        %v1908 = vsub.s32 %v1905, %v1907
        %v1909 = vrot.slane %v1893, %v1908
        %v1911 = vunpack.c.l.s4 1966171168
        %v1912 = vunpack.c.0.s8 %v1911
        %v1913 = vlaneseq
        %v1914 = vshrl.u32 %v1913, 7
        %v1915 = vsub.s32 %v1912, %v1914
        %v1916 = vrot.slane %v1894, %v1915
        %v1918 = vunpack.c.l.s4 1966171168
        %v1919 = vunpack.c.0.s8 %v1918
        %v1920 = vlaneseq
        %v1921 = vshrl.u32 %v1920, 7
        %v1922 = vsub.s32 %v1919, %v1921
        %v1923 = vrot.slane %v1895, %v1922
        %v1924 = vcombine.high %v1902, %v1902
        %v1925 = vcombine.high %v1909, %v1909
        %v1926 = vcombine.high %v1916, %v1916
        %v1927 = vcombine.high %v1923, %v1923
        %1936 = vst.msk [vmem:[%s177 + $0x4] sm:$0x1] %vm1144, %v1902
        %1937 = vst.msk [vmem:[%s177 + $0xc] sm:$0x1] %vm1144, %v1916
        %1938 = vst.msk [vmem:[%s177 + $0x14] sm:$0x1] %vm1144, %v1924
        %1939 = vst.msk [vmem:[%s177 + $0x1c] sm:$0x1] %vm1144, %v1926
        %1940 = vst.msk [vmem:[%s177 + $0x24] sm:$0x1] %vm1144, %v1909
        %1941 = vst.msk [vmem:[%s177 + $0x2c] sm:$0x1] %vm1144, %v1923
        %1942 = vst.msk [vmem:[%s177 + $0x34] sm:$0x1] %vm1144, %v1925
        %1943 = vst.msk [vmem:[%s177 + $0x3c] sm:$0x1] %vm1144, %v1927
        %1947 = vrot.lane.b32.xlu0 %v1776, 127
        %v1948 = vpop.permute.xlu0 %1947
        %1949 = vrot.lane.b32.xlu0 %v1779, 127
        %v1950 = vpop.permute.xlu0 %1949
        %1953 = vrot.lane.b32.xlu0 %v1784, 126
        %v1954 = vpop.permute.xlu0 %1953
        %1955 = vrot.lane.b32.xlu0 %v1791, 126
        %v1956 = vpop.permute.xlu0 %1955
        %v1959 = vsel %vm830, %v1204, %v1203
        %v1960 = vsel %vm833, %v1206, %v1959
        %v1961 = vsel %vm836, %v1208, %v1960
        %v1962 = vsel %vm839, %v1210, %v1961
        %v1963 = vsel %vm842, %v1211, %v1962
        %v1964 = vsel %vm845, %v1213, %v1963
        %v1965 = vsel %vm848, %v805, %v1964
        %v1966 = vsel %vm830, %v1218, %v1216
        %v1967 = vsel %vm833, %v1220, %v1966
        %v1968 = vsel %vm836, %v1222, %v1967
        %v1971 = vsel %vm842, %v1182, %v1181
        %v1972 = vsel %vm845, %v1184, %v1971
        %v1973 = vsel %vm848, %v797, %v1972
        %v1974 = vsel %vm830, %v1189, %v1187
        %v1975 = vsel %vm833, %v1191, %v1974
        %v1976 = vsel %vm836, %v1193, %v1975
        %v1977 = vsel %vm839, %v1195, %v1976
        %v1978 = vsel %vm842, %v1196, %v1977
        %v1979 = vsel %vm845, %v1198, %v1978
        %v1980 = vsel %vm848, %v813, %v1979
        %1981 = vrot.lane.b32.xlu0 %v1973, 127
        %v1982 = vpop.permute.xlu0 %1981
        %1983 = vrot.lane.b32.xlu0 %v1980, 127
        %v1984 = vpop.permute.xlu0 %1983
        %1987 = vrot.lane.b32.xlu0 %v1965, 126
        %v1988 = vpop.permute.xlu0 %1987
        %1989 = vrot.lane.b32.xlu0 %v1968, 126
        %v1990 = vpop.permute.xlu0 %1989
        %v1992 = vsel %vm1000, %v1612, %v1784
        %v1993 = vsel %vm1000, %v1950, %v1954
        %v1994 = vsel %vm1000, %v1968, %v1982
        %v1995 = vsel %vm1000, %v1990, 0
        %1997 = vmatprep.subr.mxu0 0.0
        %1998 = vmatpush1.msra.mxu0 0.0
        %1999 = vmatprep.subr.mxu0 0.0
        %2000 = vmatpush1.msra.mxu0 0.0
        %2001 = vmatprep.subr.mxu0 0.0
        %2002 = vmatpush1.msra.mxu0 %v1995
        %2003 = vmatprep.subr.mxu0 0.0
        %2004 = vmatpush1.msra.mxu0 %v1988
        %2005 = vmatprep.subr.mxu0 0.0
        %2006 = vmatpush1.msra.mxu0 %v1984
        %2007 = vmatprep.subr.mxu0 0.0
        %2008 = vmatpush1.msra.mxu0 %v1994
        %2009 = vmatprep.subr.mxu0 0.0
        %2010 = vmatpush1.msra.mxu0 %v1965
        %2011 = vmatprep.subr.mxu0 0.0
        %2012 = vmatpush1.msra.mxu0 %v1956
        %2013 = vmatprep.subr.mxu0 0.0
        %2014 = vmatpush1.msra.mxu0 %v1993
        %2015 = vmatprep.subr.mxu0 0.0
        %2016 = vmatpush1.msra.mxu0 %v1948
        %2017 = vmatprep.subr.mxu0 0.0
        %2018 = vmatpush1.msra.mxu0 %v1791
        %2019 = vmatprep.subr.mxu0 0.0
        %2020 = vmatpush1.msra.mxu0 %v1992
        %2021 = vmatprep.subr.mxu0 0.0
        %2022 = vmatpush1.msra.mxu0 %v1610
        %2023 = vmatprep.subr.mxu0 0.0
        %2024 = vmatpush1.msra.mxu0 %v1606
        %2025 = vmatprep.subr.mxu0 0.0
        %2026 = vmatpush1.msra.mxu0 %v1616
        %2027 = vmatprep.subr.mxu0 0.0
        %2028 = vmatpush1.msra.mxu0 %v1587
        %2029 = vmatprep.subr.mxu0 0.0
        %2030 = vmatpush2.msra.mxu0 0.0
        %2031 = vmatprep.subr.mxu0 0.0
        %2032 = vmatpush2.msra.mxu0 0.0
        %2033 = vmatprep.subr.mxu0 0.0
        %2034 = vmatpush2.msra.mxu0 0.0
        %2035 = vmatprep.subr.mxu0 0.0
        %2036 = vmatpush2.msra.mxu0 0.0
        %2037 = vmatprep.subr.mxu0 0.0
        %2038 = vmatpush2.msra.mxu0 0.0
        %2039 = vmatprep.subr.mxu0 0.0
        %2040 = vmatpush2.msra.mxu0 0.0
        %2041 = vmatprep.subr.mxu0 0.0
        %2042 = vmatpush2.msra.mxu0 0.0
        %2043 = vmatprep.subr.mxu0 0.0
        %2044 = vmatpush2.msra.mxu0 0.0
        %2045 = vmatprep.subr.mxu0 0.0
        %2046 = vmatpush2.msra.mxu0 0.0
        %2047 = vmatprep.subr.mxu0 0.0
        %2048 = vmatpush2.msra.mxu0 0.0
        %2049 = vmatprep.subr.mxu0 0.0
        %2050 = vmatpush2.msra.mxu0 0.0
        %2051 = vmatprep.subr.mxu0 0.0
        %2052 = vmatpush2.msra.mxu0 0.0
        %2053 = vmatprep.subr.mxu0 0.0
        %2054 = vmatpush2.msra.mxu0 0.0
        %2055 = vmatprep.subr.mxu0 0.0
        %2056 = vmatpush2.msra.mxu0 0.0
        %2057 = vmatprep.subr.mxu0 0.0
        %2058 = vmatpush2.msra.mxu0 0.0
        %2059 = vmatprep.subr.mxu0 0.0
        %2060 = vmatpush2.msra.mxu0 0.0
        %2061 = vmatprep.mubr.f32.mxu0 0.0
        %2062 = vmatmul.mubr.f32.gmra.mxu0 %v1012
        %v2063 = vpop.f32.mrf.mxu0
        %v2064 = vadd.f32 %v1008, %v2063
        %v2065 = vpop.f32.mrf.mxu0
        %2066 = vdwg.mxu0
        %v2068 = vcombine.high %v2064, %v2064
        %v2070 = vunpack.c.l.s4 1966171168
        %v2071 = vunpack.c.0.s8 %v2070
        %v2072 = vlaneseq
        %v2073 = vshrl.u32 %v2072, 7
        %v2074 = vsub.s32 %v2071, %v2073
        %v2075 = vrot.slane %v2064, %v2074
        %v2077 = vunpack.c.l.s4 1966171168
        %v2078 = vunpack.c.0.s8 %v2077
        %v2079 = vlaneseq
        %v2080 = vshrl.u32 %v2079, 7
        %v2081 = vsub.s32 %v2078, %v2080
        %v2082 = vrot.slane %v2068, %v2081
        %v2083 = vcombine.high %v2075, %v2075
        %v2084 = vcombine.high %v2082, %v2082
        %v2086 = vunpack.c.l.s4 1966171168
        %v2087 = vunpack.c.0.s8 %v2086
        %v2088 = vlaneseq
        %v2089 = vshrl.u32 %v2088, 7
        %v2090 = vsub.s32 %v2087, %v2089
        %v2091 = vrot.slane %v2075, %v2090
        %v2093 = vunpack.c.l.s4 1966171168
        %v2094 = vunpack.c.0.s8 %v2093
        %v2095 = vlaneseq
        %v2096 = vshrl.u32 %v2095, 7
        %v2097 = vsub.s32 %v2094, %v2096
        %v2098 = vrot.slane %v2082, %v2097
        %v2100 = vunpack.c.l.s4 1966171168
        %v2101 = vunpack.c.0.s8 %v2100
        %v2102 = vlaneseq
        %v2103 = vshrl.u32 %v2102, 7
        %v2104 = vsub.s32 %v2101, %v2103
        %v2105 = vrot.slane %v2083, %v2104
        %v2107 = vunpack.c.l.s4 1966171168
        %v2108 = vunpack.c.0.s8 %v2107
        %v2109 = vlaneseq
        %v2110 = vshrl.u32 %v2109, 7
        %v2111 = vsub.s32 %v2108, %v2110
        %v2112 = vrot.slane %v2084, %v2111
        %v2113 = vcombine.high %v2091, %v2091
        %v2114 = vcombine.high %v2098, %v2098
        %v2115 = vcombine.high %v2105, %v2105
        %v2116 = vcombine.high %v2112, %v2112
        %2125 = vst.msk [vmem:[%s177 + $0x5] sm:$0x1] %vm1144, %v2091
        %2126 = vst.msk [vmem:[%s177 + $0xd] sm:$0x1] %vm1144, %v2105
        %2127 = vst.msk [vmem:[%s177 + $0x15] sm:$0x1] %vm1144, %v2113
        %2128 = vst.msk [vmem:[%s177 + $0x1d] sm:$0x1] %vm1144, %v2115
        %2129 = vst.msk [vmem:[%s177 + $0x25] sm:$0x1] %vm1144, %v2098
        %2130 = vst.msk [vmem:[%s177 + $0x2d] sm:$0x1] %vm1144, %v2112
        %2131 = vst.msk [vmem:[%s177 + $0x35] sm:$0x1] %vm1144, %v2114
        %2132 = vst.msk [vmem:[%s177 + $0x3d] sm:$0x1] %vm1144, %v2116
        %2136 = vrot.lane.b32.xlu0 %v1965, 127
        %v2137 = vpop.permute.xlu0 %2136
        %2138 = vrot.lane.b32.xlu0 %v1968, 127
        %v2139 = vpop.permute.xlu0 %2138
        %2142 = vrot.lane.b32.xlu0 %v1973, 126
        %v2143 = vpop.permute.xlu0 %2142
        %2144 = vrot.lane.b32.xlu0 %v1980, 126
        %v2145 = vpop.permute.xlu0 %2144
        %v2160 = vrot.slane %v794, 7
        %v2161 = vsel %vm830, %v2160, %v792
        %v2162 = vrot.slane %v796, 6
        %v2163 = vsel %vm833, %v2162, %v2161
        %v2164 = vrot.slane %v798, 5
        %v2165 = vsel %vm836, %v2164, %v2163
        %v2166 = vrot.slane %v800, 4
        %v2167 = vsel %vm839, %v2166, %v2165
        %v2168 = vrot.slane %v802, 3
        %v2169 = vsel %vm842, %v2168, %v2167
        %v2170 = vrot.slane %v804, 2
        %v2171 = vsel %vm845, %v2170, %v2169
        %v2172 = vrot.slane %v806, 1
        %v2173 = vsel %vm848, %v2172, %v2171
        %v2174 = vrot.slane %v810, 7
        %v2175 = vsel %vm830, %v2174, %v808
        %v2176 = vrot.slane %v812, 6
        %v2177 = vsel %vm833, %v2176, %v2175
        %v2178 = vrot.slane %v814, 5
        %v2179 = vsel %vm836, %v2178, %v2177
        %v2182 = vrot.slane %v792, 4
        %v2183 = vrot.slane %v794, 3
        %v2184 = vsel %vm842, %v2183, %v2182
        %v2185 = vrot.slane %v796, 2
        %v2186 = vsel %vm845, %v2185, %v2184
        %v2187 = vrot.slane %v798, 1
        %v2188 = vsel %vm848, %v2187, %v2186
        %v2189 = vrot.slane %v802, 7
        %v2190 = vsel %vm830, %v2189, %v800
        %v2191 = vrot.slane %v804, 6
        %v2192 = vsel %vm833, %v2191, %v2190
        %v2193 = vrot.slane %v806, 5
        %v2194 = vsel %vm836, %v2193, %v2192
        %v2195 = vrot.slane %v808, 4
        %v2196 = vsel %vm839, %v2195, %v2194
        %v2197 = vrot.slane %v810, 3
        %v2198 = vsel %vm842, %v2197, %v2196
        %v2199 = vrot.slane %v812, 2
        %v2200 = vsel %vm845, %v2199, %v2198
        %v2201 = vrot.slane %v814, 1
        %v2202 = vsel %vm848, %v2201, %v2200
        %2203 = vrot.lane.b32.xlu0 %v2188, 127
        %v2204 = vpop.permute.xlu0 %2203
        %2205 = vrot.lane.b32.xlu0 %v2202, 127
        %v2206 = vpop.permute.xlu0 %2205
        %2209 = vrot.lane.b32.xlu0 %v2173, 126
        %v2210 = vpop.permute.xlu0 %2209
        %2211 = vrot.lane.b32.xlu0 %v2179, 126
        %v2212 = vpop.permute.xlu0 %2211
        %v2214 = vsel %vm1000, %v1801, %v1973
        %v2215 = vsel %vm1000, %v2139, %v2143
        %v2216 = vsel %vm1000, %v2179, %v2204
        %v2217 = vsel %vm1000, %v2212, 0
        %2219 = vmatprep.subr.mxu0 0.0
        %2220 = vmatpush1.msra.mxu0 0.0
        %2221 = vmatprep.subr.mxu0 0.0
        %2222 = vmatpush1.msra.mxu0 0.0
        %2223 = vmatprep.subr.mxu0 0.0
        %2224 = vmatpush1.msra.mxu0 %v2217
        %2225 = vmatprep.subr.mxu0 0.0
        %2226 = vmatpush1.msra.mxu0 %v2210
        %2227 = vmatprep.subr.mxu0 0.0
        %2228 = vmatpush1.msra.mxu0 %v2206
        %2229 = vmatprep.subr.mxu0 0.0
        %2230 = vmatpush1.msra.mxu0 %v2216
        %2231 = vmatprep.subr.mxu0 0.0
        %2232 = vmatpush1.msra.mxu0 %v2173
        %2233 = vmatprep.subr.mxu0 0.0
        %2234 = vmatpush1.msra.mxu0 %v2145
        %2235 = vmatprep.subr.mxu0 0.0
        %2236 = vmatpush1.msra.mxu0 %v2215
        %2237 = vmatprep.subr.mxu0 0.0
        %2238 = vmatpush1.msra.mxu0 %v2137
        %2239 = vmatprep.subr.mxu0 0.0
        %2240 = vmatpush1.msra.mxu0 %v1980
        %2241 = vmatprep.subr.mxu0 0.0
        %2242 = vmatpush1.msra.mxu0 %v2214
        %2243 = vmatprep.subr.mxu0 0.0
        %2244 = vmatpush1.msra.mxu0 %v1799
        %2245 = vmatprep.subr.mxu0 0.0
        %2246 = vmatpush1.msra.mxu0 %v1795
        %2247 = vmatprep.subr.mxu0 0.0
        %2248 = vmatpush1.msra.mxu0 %v1805
        %2249 = vmatprep.subr.mxu0 0.0
        %2250 = vmatpush1.msra.mxu0 %v1776
        %2251 = vmatprep.subr.mxu0 0.0
        %2252 = vmatpush2.msra.mxu0 0.0
        %2253 = vmatprep.subr.mxu0 0.0
        %2254 = vmatpush2.msra.mxu0 0.0
        %2255 = vmatprep.subr.mxu0 0.0
        %2256 = vmatpush2.msra.mxu0 0.0
        %2257 = vmatprep.subr.mxu0 0.0
        %2258 = vmatpush2.msra.mxu0 0.0
        %2259 = vmatprep.subr.mxu0 0.0
        %2260 = vmatpush2.msra.mxu0 0.0
        %2261 = vmatprep.subr.mxu0 0.0
        %2262 = vmatpush2.msra.mxu0 0.0
        %2263 = vmatprep.subr.mxu0 0.0
        %2264 = vmatpush2.msra.mxu0 0.0
        %2265 = vmatprep.subr.mxu0 0.0
        %2266 = vmatpush2.msra.mxu0 0.0
        %2267 = vmatprep.subr.mxu0 0.0
        %2268 = vmatpush2.msra.mxu0 0.0
        %2269 = vmatprep.subr.mxu0 0.0
        %2270 = vmatpush2.msra.mxu0 0.0
        %2271 = vmatprep.subr.mxu0 0.0
        %2272 = vmatpush2.msra.mxu0 0.0
        %2273 = vmatprep.subr.mxu0 0.0
        %2274 = vmatpush2.msra.mxu0 0.0
        %2275 = vmatprep.subr.mxu0 0.0
        %2276 = vmatpush2.msra.mxu0 0.0
        %2277 = vmatprep.subr.mxu0 0.0
        %2278 = vmatpush2.msra.mxu0 0.0
        %2279 = vmatprep.subr.mxu0 0.0
        %2280 = vmatpush2.msra.mxu0 0.0
        %2281 = vmatprep.subr.mxu0 0.0
        %2282 = vmatpush2.msra.mxu0 0.0
        %2283 = vmatprep.mubr.f32.mxu0 0.0
        %2284 = vmatmul.mubr.f32.gmra.mxu0 %v1012
        %v2285 = vpop.f32.mrf.mxu0
        %v2286 = vadd.f32 %v1008, %v2285
        %v2287 = vpop.f32.mrf.mxu0
        %2288 = vdwg.mxu0
        %v2290 = vcombine.high %v2286, %v2286
        %v2292 = vunpack.c.l.s4 1966171168
        %v2293 = vunpack.c.0.s8 %v2292
        %v2294 = vlaneseq
        %v2295 = vshrl.u32 %v2294, 7
        %v2296 = vsub.s32 %v2293, %v2295
        %v2297 = vrot.slane %v2286, %v2296
        %v2299 = vunpack.c.l.s4 1966171168
        %v2300 = vunpack.c.0.s8 %v2299
        %v2301 = vlaneseq
        %v2302 = vshrl.u32 %v2301, 7
        %v2303 = vsub.s32 %v2300, %v2302
        %v2304 = vrot.slane %v2290, %v2303
        %v2305 = vcombine.high %v2297, %v2297
        %v2306 = vcombine.high %v2304, %v2304
        %v2308 = vunpack.c.l.s4 1966171168
        %v2309 = vunpack.c.0.s8 %v2308
        %v2310 = vlaneseq
        %v2311 = vshrl.u32 %v2310, 7
        %v2312 = vsub.s32 %v2309, %v2311
        %v2313 = vrot.slane %v2297, %v2312
        %v2315 = vunpack.c.l.s4 1966171168
        %v2316 = vunpack.c.0.s8 %v2315
        %v2317 = vlaneseq
        %v2318 = vshrl.u32 %v2317, 7
        %v2319 = vsub.s32 %v2316, %v2318
        %v2320 = vrot.slane %v2304, %v2319
        %v2322 = vunpack.c.l.s4 1966171168
        %v2323 = vunpack.c.0.s8 %v2322
        %v2324 = vlaneseq
        %v2325 = vshrl.u32 %v2324, 7
        %v2326 = vsub.s32 %v2323, %v2325
        %v2327 = vrot.slane %v2305, %v2326
        %v2329 = vunpack.c.l.s4 1966171168
        %v2330 = vunpack.c.0.s8 %v2329
        %v2331 = vlaneseq
        %v2332 = vshrl.u32 %v2331, 7
        %v2333 = vsub.s32 %v2330, %v2332
        %v2334 = vrot.slane %v2306, %v2333
        %v2335 = vcombine.high %v2313, %v2313
        %v2336 = vcombine.high %v2320, %v2320
        %v2337 = vcombine.high %v2327, %v2327
        %v2338 = vcombine.high %v2334, %v2334
        %2347 = vst.msk [vmem:[%s177 + $0x6] sm:$0x1] %vm1144, %v2313
        %2348 = vst.msk [vmem:[%s177 + $0xe] sm:$0x1] %vm1144, %v2327
        %2349 = vst.msk [vmem:[%s177 + $0x16] sm:$0x1] %vm1144, %v2335
        %2350 = vst.msk [vmem:[%s177 + $0x1e] sm:$0x1] %vm1144, %v2337
        %2351 = vst.msk [vmem:[%s177 + $0x26] sm:$0x1] %vm1144, %v2320
        %2352 = vst.msk [vmem:[%s177 + $0x2e] sm:$0x1] %vm1144, %v2334
        %2353 = vst.msk [vmem:[%s177 + $0x36] sm:$0x1] %vm1144, %v2336
        %2354 = vst.msk [vmem:[%s177 + $0x3e] sm:$0x1] %vm1144, %v2338
        %2358 = vrot.lane.b32.xlu0 %v2173, 127
        %v2359 = vpop.permute.xlu0 %2358
        %2360 = vrot.lane.b32.xlu0 %v2179, 127
        %v2361 = vpop.permute.xlu0 %2360
        %2364 = vrot.lane.b32.xlu0 %v2188, 126
        %v2365 = vpop.permute.xlu0 %2364
        %2366 = vrot.lane.b32.xlu0 %v2202, 126
        %v2367 = vpop.permute.xlu0 %2366
        %v2370 = vrot.slane %v792, 1
        %v2371 = vsel %vm830, %v794, %v2370
        %v2372 = vrot.slane %v796, 7
        %v2373 = vsel %vm833, %v2372, %v2371
        %v2374 = vrot.slane %v798, 6
        %v2375 = vsel %vm836, %v2374, %v2373
        %v2376 = vrot.slane %v800, 5
        %v2377 = vsel %vm839, %v2376, %v2375
        %v2378 = vrot.slane %v802, 4
        %v2379 = vsel %vm842, %v2378, %v2377
        %v2380 = vrot.slane %v804, 3
        %v2381 = vsel %vm845, %v2380, %v2379
        %v2382 = vrot.slane %v806, 2
        %v2383 = vsel %vm848, %v2382, %v2381
        %v2384 = vrot.slane %v808, 1
        %v2385 = vsel %vm830, %v810, %v2384
        %v2386 = vrot.slane %v812, 7
        %v2387 = vsel %vm833, %v2386, %v2385
        %v2388 = vrot.slane %v814, 6
        %v2389 = vsel %vm836, %v2388, %v2387
        %v2392 = vrot.slane %v792, 5
        %v2393 = vrot.slane %v794, 4
        %v2394 = vsel %vm842, %v2393, %v2392
        %v2395 = vrot.slane %v796, 3
        %v2396 = vsel %vm845, %v2395, %v2394
        %v2397 = vrot.slane %v798, 2
        %v2398 = vsel %vm848, %v2397, %v2396
        %v2399 = vrot.slane %v800, 1
        %v2400 = vsel %vm830, %v802, %v2399
        %v2401 = vrot.slane %v804, 7
        %v2402 = vsel %vm833, %v2401, %v2400
        %v2403 = vrot.slane %v806, 6
        %v2404 = vsel %vm836, %v2403, %v2402
        %v2405 = vrot.slane %v808, 5
        %v2406 = vsel %vm839, %v2405, %v2404
        %v2407 = vrot.slane %v810, 4
        %v2408 = vsel %vm842, %v2407, %v2406
        %v2409 = vrot.slane %v812, 3
        %v2410 = vsel %vm845, %v2409, %v2408
        %v2411 = vrot.slane %v814, 2
        %v2412 = vsel %vm848, %v2411, %v2410
        %2413 = vrot.lane.b32.xlu0 %v2398, 127
        %v2414 = vpop.permute.xlu0 %2413
        %2415 = vrot.lane.b32.xlu0 %v2412, 127
        %v2416 = vpop.permute.xlu0 %2415
        %2419 = vrot.lane.b32.xlu0 %v2383, 126
        %v2420 = vpop.permute.xlu0 %2419
        %2421 = vrot.lane.b32.xlu0 %v2389, 126
        %v2422 = vpop.permute.xlu0 %2421
        %v2424 = vsel %vm1000, %v1990, %v2188
        %v2425 = vsel %vm1000, %v2361, %v2365
        %v2426 = vsel %vm1000, %v2389, %v2414
        %v2427 = vsel %vm1000, %v2422, 0
        %2429 = vmatprep.subr.mxu0 0.0
        %2430 = vmatpush1.msra.mxu0 0.0
        %2431 = vmatprep.subr.mxu0 0.0
        %2432 = vmatpush1.msra.mxu0 0.0
        %2433 = vmatprep.subr.mxu0 0.0
        %2434 = vmatpush1.msra.mxu0 %v2427
        %2435 = vmatprep.subr.mxu0 0.0
        %2436 = vmatpush1.msra.mxu0 %v2420
        %2437 = vmatprep.subr.mxu0 0.0
        %2438 = vmatpush1.msra.mxu0 %v2416
        %2439 = vmatprep.subr.mxu0 0.0
        %2440 = vmatpush1.msra.mxu0 %v2426
        %2441 = vmatprep.subr.mxu0 0.0
        %2442 = vmatpush1.msra.mxu0 %v2383
        %2443 = vmatprep.subr.mxu0 0.0
        %2444 = vmatpush1.msra.mxu0 %v2367
        %2445 = vmatprep.subr.mxu0 0.0
        %2446 = vmatpush1.msra.mxu0 %v2425
        %2447 = vmatprep.subr.mxu0 0.0
        %2448 = vmatpush1.msra.mxu0 %v2359
        %2449 = vmatprep.subr.mxu0 0.0
        %2450 = vmatpush1.msra.mxu0 %v2202
        %2451 = vmatprep.subr.mxu0 0.0
        %2452 = vmatpush1.msra.mxu0 %v2424
        %2453 = vmatprep.subr.mxu0 0.0
        %2454 = vmatpush1.msra.mxu0 %v1988
        %2455 = vmatprep.subr.mxu0 0.0
        %2456 = vmatpush1.msra.mxu0 %v1984
        %2457 = vmatprep.subr.mxu0 0.0
        %2458 = vmatpush1.msra.mxu0 %v1994
        %2459 = vmatprep.subr.mxu0 0.0
        %2460 = vmatpush1.msra.mxu0 %v1965
        %2461 = vmatprep.subr.mxu0 0.0
        %2462 = vmatpush2.msra.mxu0 0.0
        %2463 = vmatprep.subr.mxu0 0.0
        %2464 = vmatpush2.msra.mxu0 0.0
        %2465 = vmatprep.subr.mxu0 0.0
        %2466 = vmatpush2.msra.mxu0 0.0
        %2467 = vmatprep.subr.mxu0 0.0
        %2468 = vmatpush2.msra.mxu0 0.0
        %2469 = vmatprep.subr.mxu0 0.0
        %2470 = vmatpush2.msra.mxu0 0.0
        %2471 = vmatprep.subr.mxu0 0.0
        %2472 = vmatpush2.msra.mxu0 0.0
        %2473 = vmatprep.subr.mxu0 0.0
        %2474 = vmatpush2.msra.mxu0 0.0
        %2475 = vmatprep.subr.mxu0 0.0
        %2476 = vmatpush2.msra.mxu0 0.0
        %2477 = vmatprep.subr.mxu0 0.0
        %2478 = vmatpush2.msra.mxu0 0.0
        %2479 = vmatprep.subr.mxu0 0.0
        %2480 = vmatpush2.msra.mxu0 0.0
        %2481 = vmatprep.subr.mxu0 0.0
        %2482 = vmatpush2.msra.mxu0 0.0
        %2483 = vmatprep.subr.mxu0 0.0
        %2484 = vmatpush2.msra.mxu0 0.0
        %2485 = vmatprep.subr.mxu0 0.0
        %2486 = vmatpush2.msra.mxu0 0.0
        %2487 = vmatprep.subr.mxu0 0.0
        %2488 = vmatpush2.msra.mxu0 0.0
        %2489 = vmatprep.subr.mxu0 0.0
        %2490 = vmatpush2.msra.mxu0 0.0
        %2491 = vmatprep.subr.mxu0 0.0
        %2492 = vmatpush2.msra.mxu0 0.0
        %2493 = vmatprep.mubr.f32.mxu0 0.0
        %2494 = vmatmul.mubr.f32.gmra.mxu0 %v1012
        %v2495 = vpop.f32.mrf.mxu0
        %v2496 = vadd.f32 %v1008, %v2495
        %v2497 = vpop.f32.mrf.mxu0
        %2498 = vdwg.mxu0
        %v2500 = vcombine.high %v2496, %v2496
        %v2502 = vunpack.c.l.s4 1966171168
        %v2503 = vunpack.c.0.s8 %v2502
        %v2504 = vlaneseq
        %v2505 = vshrl.u32 %v2504, 7
        %v2506 = vsub.s32 %v2503, %v2505
        %v2507 = vrot.slane %v2496, %v2506
        %v2509 = vunpack.c.l.s4 1966171168
        %v2510 = vunpack.c.0.s8 %v2509
        %v2511 = vlaneseq
        %v2512 = vshrl.u32 %v2511, 7
        %v2513 = vsub.s32 %v2510, %v2512
        %v2514 = vrot.slane %v2500, %v2513
        %v2515 = vcombine.high %v2507, %v2507
        %v2516 = vcombine.high %v2514, %v2514
        %v2518 = vunpack.c.l.s4 1966171168
        %v2519 = vunpack.c.0.s8 %v2518
        %v2520 = vlaneseq
        %v2521 = vshrl.u32 %v2520, 7
        %v2522 = vsub.s32 %v2519, %v2521
        %v2523 = vrot.slane %v2507, %v2522
        %v2525 = vunpack.c.l.s4 1966171168
        %v2526 = vunpack.c.0.s8 %v2525
        %v2527 = vlaneseq
        %v2528 = vshrl.u32 %v2527, 7
        %v2529 = vsub.s32 %v2526, %v2528
        %v2530 = vrot.slane %v2514, %v2529
        %v2532 = vunpack.c.l.s4 1966171168
        %v2533 = vunpack.c.0.s8 %v2532
        %v2534 = vlaneseq
        %v2535 = vshrl.u32 %v2534, 7
        %v2536 = vsub.s32 %v2533, %v2535
        %v2537 = vrot.slane %v2515, %v2536
        %v2539 = vunpack.c.l.s4 1966171168
        %v2540 = vunpack.c.0.s8 %v2539
        %v2541 = vlaneseq
        %v2542 = vshrl.u32 %v2541, 7
        %v2543 = vsub.s32 %v2540, %v2542
        %v2544 = vrot.slane %v2516, %v2543
        %v2545 = vcombine.high %v2523, %v2523
        %v2546 = vcombine.high %v2530, %v2530
        %v2547 = vcombine.high %v2537, %v2537
        %v2548 = vcombine.high %v2544, %v2544
        %2557 = vst.msk [vmem:[%s177 + $0x7] sm:$0x1] %vm1144, %v2523
        %2558 = vst.msk [vmem:[%s177 + $0xf] sm:$0x1] %vm1144, %v2537
        %2559 = vst.msk [vmem:[%s177 + $0x17] sm:$0x1] %vm1144, %v2545
        %2560 = vst.msk [vmem:[%s177 + $0x1f] sm:$0x1] %vm1144, %v2547
        %2561 = vst.msk [vmem:[%s177 + $0x27] sm:$0x1] %vm1144, %v2530
        %2562 = vst.msk [vmem:[%s177 + $0x2f] sm:$0x1] %vm1144, %v2544
        %2563 = vst.msk [vmem:[%s177 + $0x37] sm:$0x1] %vm1144, %v2546
        %2564 = vst.msk [vmem:[%s177 + $0x3f] sm:$0x1] %vm1144, %v2548
        %s2565 = sand.u32 %s107, 1
        %s2566 = scalar_lea.sflag [#allocation3], %s2565
        %s2567 = sand.u32 %s107, 1
        %s2568 = smul.addr %s2567, 64
        %s2569 = scalar_lea.vmem [#allocation2], %s2568
        // Predicated region
        $region33: #{conv3d_aware_dmtet_rollout.1} parent=31 // pred_check
          %p2570 = pneg %p117
        $region34: #{conv3d_aware_dmtet_rollout.1} parent=31 // pred_check_branch
          %2572 = sbr.rel (%p2570) target = $region36
        $region35: #{conv3d_aware_dmtet_rollout.1} parent=31 // pred_region
          %s2574 = ssub.s32 1024, 1024
          %2575 = vsyncadd %s2566, %s2574
          %s2576 = smul.addr %s21, 16
          %s2577 = sadd.s32 %s22, %s2576
          %s2578 = smul.addr %s2577, 128
          %s2579 = scalar_lea.hbm %s3, %s2578
          %s2580 = sshll.u32 %s2569, 4
          %s2581 = int_to_ptr.vmem [resolvable:$true] %s2580
          %2586 = dma.vmem_to_hbm [thread:$0]  %s2581, 1024, %s2579, %s2566, 128, 256, 8
        $region36: #{conv3d_aware_dmtet_rollout.1} parent=31 // pred_fallthru
          _
      $region32: #{conv3d_aware_dmtet_rollout.1} parent=5 // pred_fallthru
        _
      %p2587 = scmp.le.s32.totalorder 2, %s12
      // Predicated region
      $region37: #{conv3d_aware_dmtet_rollout.1} parent=5 // pred_check
        %p2588 = pneg %p2587
      $region38: #{conv3d_aware_dmtet_rollout.1} parent=5 // pred_check_branch
        %2590 = sbr.rel (%p2588) target = $region40
      $region39: #{conv3d_aware_dmtet_rollout.1} parent=5 // pred_region
        %s2591 = ssub.s32 %s12, 2
        // Predicated region
        $region41: #{conv3d_aware_dmtet_rollout.1} parent=39 // pred_check
          %p2592 = pneg %p123
        $region42: #{conv3d_aware_dmtet_rollout.1} parent=39 // pred_check_branch
          %2594 = sbr.rel (%p2592) target = $region44
        $region43: #{conv3d_aware_dmtet_rollout.1} parent=39 // pred_region
          %s2595 = sand.u32 %s108, 1
          %s2596 = scalar_lea.sflag [#allocation3], %s2595
          %s2597 = sand.u32 %s108, 1
          %s2598 = smul.addr %s2597, 64
          %s2599 = scalar_lea.vmem [#allocation2], %s2598
          %2600 = dma.done %s2596, 1024
        $region44: #{conv3d_aware_dmtet_rollout.1} parent=39 // pred_fallthru
          _
      $region40: #{conv3d_aware_dmtet_rollout.1} parent=5 // pred_fallthru
        _
    $region6: #{conv3d_aware_dmtet_rollout.1} parent=1 // loop_footer
      %s16 = sadd.s32 1, %s12
    $region7: #{conv3d_aware_dmtet_rollout.1} parent=1 // loop_footer_branch
      %11 = sbr.rel target = $region3
    $region8: #{conv3d_aware_dmtet_rollout.1} parent=1 // loop_exit
      _
    %2601 = vsyncpa [#allocation3], 1
    %s2602 = scalar_lea.sflag [#allocation3], 1
    %2603 = vsyncpa %s2602, 1

</llo_original>
